<compile_context>
chip_gen: v7x
topology: tpu7x:2x2x1
jax: 0.10.0
libtpu: 0.0.40
codegen_flags: <defaults>
</compile_context>

<pallas_src>
import functools

import jax
import jax.numpy as jnp
from jax.experimental import pallas as pl
from jax.experimental.pallas import tpu as pltpu


# ----------------------------- Pallas kernel --------------------------------
def gcn_fused_kernel(a_ref, s_ref, xw1_ref, b1_ref, w2_ref, b2_ref, o_ref,
                     z2_ref, *, tm, a_resident):
    """Fused 2-layer GCN (aggregation fused across both layers).

    a_ref  : int8  -- (TM, N_pad) row tile, or (N_pad, N_pad) when resident
    s_ref  : f32   -- (N_pad, 1) per-row dequant scales of A_hat (resident)
    xw1_ref: bf16  -- (N_pad, H_pad) precomputed X @ W1 (resident)
    b1_ref : f32   -- (1, H_pad)
    w2_ref : bf16  -- (H_pad, C_pad)
    b2_ref : f32   -- (1, C_pad)
    o_ref  : f32   -- (TM, C_pad) output row tile (written only in phase 1)
    z2_ref : bf16  -- (N_pad, C_pad) VMEM scratch: relu(layer1) @ W2
    """
    phase = pl.program_id(0)
    i = pl.program_id(1)
    row0 = pl.multiple_of(i * tm, tm)

    # int8 -> bf16 convert is VPU work (free slack in this HBM-bound kernel);
    # the per-row scale is folded in AFTER the dot, so the MXU always sees bf16
    # (generation agnostic: no int8/fp8 MXU path required).
    if a_resident:
        a_bf = a_ref[pl.ds(row0, tm), :].astype(jnp.bfloat16)
    else:
        a_bf = a_ref[...].astype(jnp.bfloat16)
    scale = s_ref[pl.ds(row0, tm), :]                      # (tm, 1) f32

    # Phase 0: layer-1 aggregation + bias + relu, immediately project by W2 and
    # park the result in the persistent VMEM scratch (x1 never touches HBM).
    @pl.when(phase == 0)
    def _():
        agg1 = jnp.dot(a_bf, xw1_ref[...], preferred_element_type=jnp.float32)
        h1 = jnp.maximum(agg1 * scale + b1_ref[...], 0.0)
        # TODO(synk): F.dropout is identity in eval mode; training-mode
        # stochastic dropout (pltpu.prng_random_bits mask) not implemented.
        z2 = jnp.dot(h1.astype(w2_ref.dtype), w2_ref[...],
                     preferred_element_type=jnp.float32)
        z2_ref[pl.ds(row0, tm), :] = z2.astype(z2_ref.dtype)

    # Phase 1: layer-2 aggregation + bias -> output tile.
    @pl.when(phase == 1)
    def _():
        agg2 = jnp.dot(a_bf, z2_ref[...], preferred_element_type=jnp.float32)
        o_ref[...] = (agg2 * scale + b2_ref[...]).astype(o_ref.dtype)


def gcn_fused(a_q, a_scale, xw1, b1, w2, b2, *, tm, a_resident, vmem_limit):
    n_pad = a_q.shape[0]
    h_pad = xw1.shape[1]
    c_pad = w2.shape[1]
    nt = n_pad // tm

    # Advisory cost (X @ W1 is hoisted outside the kernel).
    flops = (2 * n_pad * n_pad * h_pad          # A_hat @ XW1
             + 2 * n_pad * h_pad * c_pad        # H1 @ W2
             + 2 * n_pad * n_pad * c_pad)       # A_hat @ Z2
    bytes_accessed = (n_pad * n_pad * (1 if a_resident else 2)   # int8 A_hat
                      + n_pad * 4                                # row scales
                      + n_pad * h_pad * 2                        # XW1 (bf16)
                      + h_pad * c_pad * 2
                      + (h_pad + c_pad) * 4
                      + n_pad * c_pad * 4)                       # output (f32)

    def build(single_buffer):
        inv_kw = {"pipeline_mode": pl.Buffered(1)} if single_buffer else {}

        def inv_spec(shape):
            # Grid-invariant operand: constant index_map (+ single buffer).
            return pl.BlockSpec(shape, lambda p, i: (0, 0), **inv_kw)

        if a_resident:
            a_spec = inv_spec((n_pad, n_pad))            # DMA'd once, resident
        else:
            a_spec = pl.BlockSpec((tm, n_pad), lambda p, i: (i, 0))  # streamed

        return pl.pallas_call(
            functools.partial(gcn_fused_kernel, tm=tm, a_resident=a_resident),
            out_shape=jax.ShapeDtypeStruct((n_pad, c_pad), jnp.float32),
            grid_spec=pltpu.PrefetchScalarGridSpec(
                num_scalar_prefetch=0,
                grid=(2, nt),                             # (phase, row tile)
                in_specs=[
                    a_spec,                               # A_hat (int8)
                    inv_spec((n_pad, 1)),                 # per-row scales
                    inv_spec((n_pad, h_pad)),             # X @ W1
                    inv_spec((1, h_pad)),                 # b1
                    inv_spec((h_pad, c_pad)),             # W2
                    inv_spec((1, c_pad)),                 # b2
                ],
                # (i*p, 0): all phase-0 steps map to block 0 -> the untouched
                # output buffer is never written back to HBM during phase 0.
                out_specs=pl.BlockSpec((tm, c_pad), lambda p, i: (i * p, 0)),
                scratch_shapes=[pltpu.VMEM((n_pad, c_pad), jnp.bfloat16)],
            ),
            compiler_params=pltpu.CompilerParams(
                # Z2 scratch carries phase0 -> phase1 dependency: sequential grid.
                dimension_semantics=("arbitrary", "arbitrary"),
                vmem_limit_bytes=vmem_limit,
            ),
            cost_estimate=pl.CostEstimate(flops=flops, transcendentals=0,
                                          bytes_accessed=bytes_accessed),
        )

    try:
        return build(single_buffer=True)(a_q, a_scale, xw1, b1, w2, b2)
    except Exception:
        # pipeline_mode=pl.Buffered(1) unsupported in this build: fall back to
        # default double buffering (extra VMEM only; semantics unchanged).
        return build(single_buffer=False)(a_q, a_scale, xw1, b1, w2, b2)


# ------------------------------- JAX glue ------------------------------------
def _round_up(x, m):
    return (x + m - 1) // m * m


def build_norm_adj(edge_index, num_nodes):
    """Dense A_hat = D^-1/2 (A + I) D^-1/2 from an int [2, E] edge_index.

    Matches PyG gcn_norm: duplicate edges scatter-ADD and self-loops are added
    only for nodes that lack one.
    """
    src, dst = edge_index[0], edge_index[1]
    adj = jnp.zeros((num_nodes, num_nodes), jnp.float32)
    adj = adj.at[dst, src].add(1.0)                       # message flows src -> dst
    diag = jnp.diagonal(adj)
    adj = adj + jnp.diag(jnp.where(diag == 0, 1.0, 0.0))  # add_remaining_self_loops
    deg = adj.sum(axis=1)
    d_inv_sqrt = jnp.where(deg > 0, 1.0 / jnp.sqrt(deg), 0.0)
    return d_inv_sqrt[:, None] * adj * d_inv_sqrt[None, :]
    # TODO(synk): for realistically sparse graphs, replace the dense N x N
    # A_hat with a scalar-prefetch (PrefetchScalarGridSpec) CSR aggregation.


def _quantize_rows_int8(a):
    """Per-row symmetric int8 quantization: a[i, j] ~= q[i, j] * scale[i]."""
    amax = jnp.max(jnp.abs(a), axis=1, keepdims=True)
    scale = amax / 127.0
    safe = jnp.where(scale > 0, scale, 1.0)
    q = jnp.clip(jnp.round(a / safe), -127.0, 127.0).astype(jnp.int8)
    return q, scale.astype(jnp.float32)


def _plan(n_pad, h_pad, c_pad):
    """Pick tm, A-residency and the scoped-VMEM limit for this generation."""
    try:
        info = pltpu.get_tpu_info()
        vmem_cap = int(getattr(info, "vmem_capacity_bytes", 0)) or 64 * 1024 * 1024
    except Exception:
        vmem_cap = 64 * 1024 * 1024                       # safe on all generations
    budget = int(0.80 * vmem_cap)

    # Budget assumes worst-case double buffering (fallback path still fits).
    fixed = (2 * n_pad * 4                                # row scales (f32)
             + 2 * n_pad * h_pad * 2                      # XW1 (bf16)
             + 2 * h_pad * c_pad * 2                      # W2 (bf16)
             + 2 * (h_pad + c_pad) * 4                    # biases
             + n_pad * c_pad * 2)                         # Z2 scratch (bf16)

    tm = 128
    for cand in (512, 256, 128):                          # multiples of 32 (int8)
        if n_pad % cand == 0 and fixed + 2 * cand * (n_pad + 4 * c_pad) <= budget:
            tm = cand
            break

    a_resident = fixed + 2 * (n_pad * n_pad + tm * c_pad * 4) <= budget
    if a_resident:
        need = fixed + 2 * (n_pad * n_pad + tm * c_pad * 4)
    else:
        need = fixed + 2 * (tm * n_pad + tm * c_pad * 4)

    vmem_limit = max(32 * 1024 * 1024,
                     min(int(1.25 * need) + (4 << 20), int(0.9 * vmem_cap)))
    return tm, a_resident, vmem_limit


def gcn_forward(x, edge_index, params):
    """Matches GCN.forward: conv1 -> relu -> dropout(eval) -> conv2."""
    n, f_in = x.shape
    h = params["w1"].shape[1]
    c = params["w2"].shape[1]

    n_pad = _round_up(n, 128)
    h_pad = _round_up(h, 128)
    c_pad = _round_up(c, 128)

    # Normalized adjacency -> int8 + per-row scales (halves the dominant stream).
    a_hat = build_norm_adj(edge_index, n)
    a_hat = jnp.pad(a_hat, ((0, n_pad - n), (0, n_pad - n)))
    a_q, a_scale = _quantize_rows_int8(a_hat)

    # Hoist X @ W1 out of the fused kernel (small dense GEMM, plain XLA).
    xw1 = jnp.dot(x, params["w1"], preferred_element_type=jnp.float32)
    xw1 = jnp.pad(xw1, ((0, n_pad - n), (0, h_pad - h))).astype(jnp.bfloat16)

    b1_p = jnp.pad(params["b1"], ((0, 0), (0, h_pad - h))).astype(jnp.float32)
    w2_p = jnp.pad(params["w2"], ((0, h_pad - h), (0, c_pad - c))).astype(jnp.bfloat16)
    b2_p = jnp.pad(params["b2"], ((0, 0), (0, c_pad - c))).astype(jnp.float32)

    tm, a_resident, vmem_limit = _plan(n_pad, h_pad, c_pad)
    out = gcn_fused(a_q, a_scale, xw1, b1_p, w2_p, b2_p,
                    tm=tm, a_resident=a_resident, vmem_limit=vmem_limit)
    return out[:n, :c]


def init_params(key, input_dim, hidden_dim, num_classes):
    k1, k2 = jax.random.split(key)
    # glorot-uniform weights, zero bias (GCNConv defaults)
    lim1 = jnp.sqrt(6.0 / (input_dim + hidden_dim))
    lim2 = jnp.sqrt(6.0 / (hidden_dim + num_classes))
    return {
        "w1": jax.random.uniform(k1, (input_dim, hidden_dim), jnp.float32,
                                 -lim1, lim1),
        "b1": jnp.zeros((1, hidden_dim), jnp.float32),
        "w2": jax.random.uniform(k2, (hidden_dim, num_classes), jnp.float32,
                                 -lim2, lim2),
        "b2": jnp.zeros((1, num_classes), jnp.float32),
    }


if __name__ == "__main__":
    # Small, deterministic synthetic graph.
    num_nodes = 16
    input_dim = 8
    hidden_dim = 32
    num_classes = 4
    num_edges = 32

    key = jax.random.PRNGKey(0)
    kx, ke, kp = jax.random.split(key, 3)

    x = jax.random.normal(kx, (num_nodes, input_dim), jnp.float32)
    edge_index = jax.random.randint(ke, (2, num_edges), 0, num_nodes,
                                    dtype=jnp.int32)
    params = init_params(kp, input_dim, hidden_dim, num_classes)

    out = gcn_forward(x, edge_index, params)
    out = jax.block_until_ready(out)
    assert out.shape == (num_nodes, num_classes)
    assert bool(jnp.all(jnp.isfinite(out)))
    print("KERNEL_OK")
</pallas_src>

<mosaic_0001>
module attributes {stable_mosaic.version = 11 : i64} {
  func.func @gcn_fused_kernel(%arg0: i32, %arg1: i32, %arg2: memref<128x128xi8, #tpu.memory_space<vmem>>, %arg3: memref<128x1xf32, #tpu.memory_space<vmem>>, %arg4: memref<128x128xbf16, #tpu.memory_space<vmem>>, %arg5: memref<1x128xf32, #tpu.memory_space<vmem>>, %arg6: memref<128x128xbf16, #tpu.memory_space<vmem>>, %arg7: memref<1x128xf32, #tpu.memory_space<vmem>>, %arg8: memref<128x128xf32, #tpu.memory_space<vmem>>, %arg9: memref<128x128xbf16, #tpu.memory_space<vmem>>) attributes {dimension_semantics = [#tpu.dimension_semantics<arbitrary>, #tpu.dimension_semantics<arbitrary>], iteration_bounds = array<i64: 2, 1>, scalar_prefetch = 0 : i64, scratch_operands = 1 : i64, tpu.core_type = #tpu.core_type<tc>, window_params = [{pipeline_mode = #tpu.pipeline_mode<synchronous>, transform_indices = @transform_0, window_bounds = array<i64: 128, 128>}, {pipeline_mode = #tpu.pipeline_mode<synchronous>, transform_indices = @transform_1, window_bounds = array<i64: 128, 1>}, {pipeline_mode = #tpu.pipeline_mode<synchronous>, transform_indices = @transform_2, window_bounds = array<i64: 128, 128>}, {pipeline_mode = #tpu.pipeline_mode<synchronous>, transform_indices = @transform_3, window_bounds = array<i64: 1, 128>}, {pipeline_mode = #tpu.pipeline_mode<synchronous>, transform_indices = @transform_4, window_bounds = array<i64: 128, 128>}, {pipeline_mode = #tpu.pipeline_mode<synchronous>, transform_indices = @transform_5, window_bounds = array<i64: 1, 128>}, {transform_indices = @transform_6, window_bounds = array<i64: 128, 128>}]} {
    %c128_i32 = arith.constant 128 : i32
    %0 = arith.muli %arg1, %c128_i32 : i32
    %1 = tpu.assume_multiple %0, 128 : i32
    %2 = arith.index_cast %1 : i32 to index
    %c0 = arith.constant 0 : index
    %3 = vector.load %arg2[%2, %c0] : memref<128x128xi8, #tpu.memory_space<vmem>>, vector<128x128xi8>
    %4 = arith.sitofp %3 : vector<128x128xi8> to vector<128x128xbf16>
    %5 = arith.index_cast %1 : i32 to index
    %c0_0 = arith.constant 0 : index
    %6 = vector.load %arg3[%5, %c0_0] : memref<128x1xf32, #tpu.memory_space<vmem>>, vector<128x1xf32>
    %c0_i32 = arith.constant 0 : i32
    %7 = arith.cmpi eq, %arg0, %c0_i32 : i32
    %8 = arith.extui %7 : i1 to i32
    %c0_i32_1 = arith.constant 0 : i32
    %9 = arith.cmpi ne, %8, %c0_i32_1 : i32
    scf.if %9 {
      %c0_3 = arith.constant 0 : index
      %c0_4 = arith.constant 0 : index
      %13 = vector.load %arg4[%c0_3, %c0_4] : memref<128x128xbf16, #tpu.memory_space<vmem>>, vector<128x128xbf16>
      %cst = arith.constant dense<0.000000e+00> : vector<128x128xf32>
      %14 = tpu.matmul %4, %13, %cst {dimension_numbers = #tpu.dot_dimension_numbers<[1], [0], [0], [1], [0, 0, 1, 1], [], []>} : vector<128x128xbf16>, vector<128x128xbf16>, vector<128x128xf32> -> vector<128x128xf32>
      %15 = vector.broadcast %6 : vector<128x1xf32> to vector<128x128xf32>
      %16 = arith.mulf %14, %15 : vector<128x128xf32>
      %c0_5 = arith.constant 0 : index
      %c0_6 = arith.constant 0 : index
      %17 = vector.load %arg5[%c0_5, %c0_6] : memref<1x128xf32, #tpu.memory_space<vmem>>, vector<1x128xf32>
      %18 = vector.broadcast %17 : vector<1x128xf32> to vector<128x128xf32>
      %19 = arith.addf %16, %18 : vector<128x128xf32>
      %cst_7 = arith.constant 0.000000e+00 : f32
      %20 = vector.broadcast %cst_7 : f32 to vector<128x128xf32>
      %21 = arith.maximumf %19, %20 : vector<128x128xf32>
      %22 = arith.truncf %21 : vector<128x128xf32> to vector<128x128xbf16>
      %c0_8 = arith.constant 0 : index
      %c0_9 = arith.constant 0 : index
      %23 = vector.load %arg6[%c0_8, %c0_9] : memref<128x128xbf16, #tpu.memory_space<vmem>>, vector<128x128xbf16>
      %cst_10 = arith.constant dense<0.000000e+00> : vector<128x128xf32>
      %24 = tpu.matmul %22, %23, %cst_10 {dimension_numbers = #tpu.dot_dimension_numbers<[1], [0], [0], [1], [0, 0, 1, 1], [], []>} : vector<128x128xbf16>, vector<128x128xbf16>, vector<128x128xf32> -> vector<128x128xf32>
      %25 = arith.truncf %24 : vector<128x128xf32> to vector<128x128xbf16>
      %26 = arith.index_cast %1 : i32 to index
      %c0_11 = arith.constant 0 : index
      %27 = vector.load %arg9[%26, %c0_11] : memref<128x128xbf16, #tpu.memory_space<vmem>>, vector<128x128xbf16>
      tpu.vector_store %arg9[%26, %c0_11], %25 {strides = array<i32>} : memref<128x128xbf16, #tpu.memory_space<vmem>>, vector<128x128xbf16>,
    } else {
    }
    %c1_i32 = arith.constant 1 : i32
    %10 = arith.cmpi eq, %arg0, %c1_i32 : i32
    %11 = arith.extui %10 : i1 to i32
    %c0_i32_2 = arith.constant 0 : i32
    %12 = arith.cmpi ne, %11, %c0_i32_2 : i32
    scf.if %12 {
      %c0_3 = arith.constant 0 : index
      %c0_4 = arith.constant 0 : index
      %13 = vector.load %arg9[%c0_3, %c0_4] : memref<128x128xbf16, #tpu.memory_space<vmem>>, vector<128x128xbf16>
      %cst = arith.constant dense<0.000000e+00> : vector<128x128xf32>
      %14 = tpu.matmul %4, %13, %cst {dimension_numbers = #tpu.dot_dimension_numbers<[1], [0], [0], [1], [0, 0, 1, 1], [], []>} : vector<128x128xbf16>, vector<128x128xbf16>, vector<128x128xf32> -> vector<128x128xf32>
      %15 = vector.broadcast %6 : vector<128x1xf32> to vector<128x128xf32>
      %16 = arith.mulf %14, %15 : vector<128x128xf32>
      %c0_5 = arith.constant 0 : index
      %c0_6 = arith.constant 0 : index
      %17 = vector.load %arg7[%c0_5, %c0_6] : memref<1x128xf32, #tpu.memory_space<vmem>>, vector<1x128xf32>
      %18 = vector.broadcast %17 : vector<1x128xf32> to vector<128x128xf32>
      %19 = arith.addf %16, %18 : vector<128x128xf32>
      %c0_7 = arith.constant 0 : index
      %c0_8 = arith.constant 0 : index
      %20 = vector.load %arg8[%c0_7, %c0_8] : memref<128x128xf32, #tpu.memory_space<vmem>>, vector<128x128xf32>
      tpu.vector_store %arg8[%c0_7, %c0_8], %19 {strides = array<i32>} : memref<128x128xf32, #tpu.memory_space<vmem>>, vector<128x128xf32>,
    } else {
    }
    return
  }
  func.func @transform_0(%arg0: i32, %arg1: i32) -> (i32, i32) {
    %c0_i32 = arith.constant 0 : i32
    %c0_i32_0 = arith.constant 0 : i32
    %c0_i32_1 = arith.constant 0 : i32
    return %c0_i32, %c0_i32_0 : i32, i32
  }
  func.func @transform_1(%arg0: i32, %arg1: i32) -> (i32, i32) {
    %c0_i32 = arith.constant 0 : i32
    %c0_i32_0 = arith.constant 0 : i32
    %c0_i32_1 = arith.constant 0 : i32
    return %c0_i32, %c0_i32_0 : i32, i32
  }
  func.func @transform_2(%arg0: i32, %arg1: i32) -> (i32, i32) {
    %c0_i32 = arith.constant 0 : i32
    %c0_i32_0 = arith.constant 0 : i32
    %c0_i32_1 = arith.constant 0 : i32
    return %c0_i32, %c0_i32_0 : i32, i32
  }
  func.func @transform_3(%arg0: i32, %arg1: i32) -> (i32, i32) {
    %c0_i32 = arith.constant 0 : i32
    %c0_i32_0 = arith.constant 0 : i32
    %c0_i32_1 = arith.constant 0 : i32
    return %c0_i32, %c0_i32_0 : i32, i32
  }
  func.func @transform_4(%arg0: i32, %arg1: i32) -> (i32, i32) {
    %c0_i32 = arith.constant 0 : i32
    %c0_i32_0 = arith.constant 0 : i32
    %c0_i32_1 = arith.constant 0 : i32
    return %c0_i32, %c0_i32_0 : i32, i32
  }
  func.func @transform_5(%arg0: i32, %arg1: i32) -> (i32, i32) {
    %c0_i32 = arith.constant 0 : i32
    %c0_i32_0 = arith.constant 0 : i32
    %c0_i32_1 = arith.constant 0 : i32
    return %c0_i32, %c0_i32_0 : i32, i32
  }
  func.func @transform_6(%arg0: i32, %arg1: i32) -> (i32, i32) {
    %0 = arith.muli %arg1, %arg0 : i32
    %c0_i32 = arith.constant 0 : i32
    %c0_i32_0 = arith.constant 0 : i32
    return %0, %c0_i32 : i32, i32
  }
}

module attributes {stable_mosaic.version = 11 : i64} {
  func.func @gcn_fused_kernel(%arg0: i32, %arg1: i32, %arg2: memref<128x128xi8, #tpu.memory_space<vmem>>, %arg3: memref<128x1xf32, #tpu.memory_space<vmem>>, %arg4: memref<128x128xbf16, #tpu.memory_space<vmem>>, %arg5: memref<1x128xf32, #tpu.memory_space<vmem>>, %arg6: memref<128x128xbf16, #tpu.memory_space<vmem>>, %arg7: memref<1x128xf32, #tpu.memory_space<vmem>>, %arg8: memref<128x128xf32, #tpu.memory_space<vmem>>, %arg9: memref<128x128xbf16, #tpu.memory_space<vmem>>) attributes {dimension_semantics = [#tpu.dimension_semantics<arbitrary>, #tpu.dimension_semantics<arbitrary>], iteration_bounds = array<i64: 2, 1>, scalar_prefetch = 0 : i64, scratch_operands = 1 : i64, tpu.core_type = #tpu.core_type<tc>, window_params = [{pipeline_mode = #tpu.pipeline_mode<synchronous>, transform_indices = @transform_0, window_bounds = array<i64: 128, 128>}, {pipeline_mode = #tpu.pipeline_mode<synchronous>, transform_indices = @transform_1, window_bounds = array<i64: 128, 1>}, {pipeline_mode = #tpu.pipeline_mode<synchronous>, transform_indices = @transform_2, window_bounds = array<i64: 128, 128>}, {pipeline_mode = #tpu.pipeline_mode<synchronous>, transform_indices = @transform_3, window_bounds = array<i64: 1, 128>}, {pipeline_mode = #tpu.pipeline_mode<synchronous>, transform_indices = @transform_4, window_bounds = array<i64: 128, 128>}, {pipeline_mode = #tpu.pipeline_mode<synchronous>, transform_indices = @transform_5, window_bounds = array<i64: 1, 128>}, {transform_indices = @transform_6, window_bounds = array<i64: 128, 128>}]} {
    %c128_i32 = arith.constant 128 : i32
    %0 = arith.muli %arg1, %c128_i32 : i32
    %1 = tpu.assume_multiple %0, 128 : i32
    %2 = arith.index_cast %1 : i32 to index
    %c0 = arith.constant 0 : index
    %3 = vector.load %arg2[%2, %c0] : memref<128x128xi8, #tpu.memory_space<vmem>>, vector<128x128xi8>
    %4 = arith.sitofp %3 : vector<128x128xi8> to vector<128x128xbf16>
    %5 = arith.index_cast %1 : i32 to index
    %c0_0 = arith.constant 0 : index
    %6 = vector.load %arg3[%5, %c0_0] : memref<128x1xf32, #tpu.memory_space<vmem>>, vector<128x1xf32>
    %c0_i32 = arith.constant 0 : i32
    %7 = arith.cmpi eq, %arg0, %c0_i32 : i32
    %8 = arith.extui %7 : i1 to i32
    %c0_i32_1 = arith.constant 0 : i32
    %9 = arith.cmpi ne, %8, %c0_i32_1 : i32
    scf.if %9 {
      %c0_3 = arith.constant 0 : index
      %c0_4 = arith.constant 0 : index
      %13 = vector.load %arg4[%c0_3, %c0_4] : memref<128x128xbf16, #tpu.memory_space<vmem>>, vector<128x128xbf16>
      %cst = arith.constant dense<0.000000e+00> : vector<128x128xf32>
      %14 = tpu.matmul %4, %13, %cst {dimension_numbers = #tpu.dot_dimension_numbers<[1], [0], [0], [1], [0, 0, 1, 1], [], []>} : vector<128x128xbf16>, vector<128x128xbf16>, vector<128x128xf32> -> vector<128x128xf32>
      %15 = vector.broadcast %6 : vector<128x1xf32> to vector<128x128xf32>
      %16 = arith.mulf %14, %15 : vector<128x128xf32>
      %c0_5 = arith.constant 0 : index
      %c0_6 = arith.constant 0 : index
      %17 = vector.load %arg5[%c0_5, %c0_6] : memref<1x128xf32, #tpu.memory_space<vmem>>, vector<1x128xf32>
      %18 = vector.broadcast %17 : vector<1x128xf32> to vector<128x128xf32>
      %19 = arith.addf %16, %18 : vector<128x128xf32>
      %cst_7 = arith.constant 0.000000e+00 : f32
      %20 = vector.broadcast %cst_7 : f32 to vector<128x128xf32>
      %21 = arith.maximumf %19, %20 : vector<128x128xf32>
      %22 = arith.truncf %21 : vector<128x128xf32> to vector<128x128xbf16>
      %c0_8 = arith.constant 0 : index
      %c0_9 = arith.constant 0 : index
      %23 = vector.load %arg6[%c0_8, %c0_9] : memref<128x128xbf16, #tpu.memory_space<vmem>>, vector<128x128xbf16>
      %cst_10 = arith.constant dense<0.000000e+00> : vector<128x128xf32>
      %24 = tpu.matmul %22, %23, %cst_10 {dimension_numbers = #tpu.dot_dimension_numbers<[1], [0], [0], [1], [0, 0, 1, 1], [], []>} : vector<128x128xbf16>, vector<128x128xbf16>, vector<128x128xf32> -> vector<128x128xf32>
      %25 = arith.truncf %24 : vector<128x128xf32> to vector<128x128xbf16>
      %26 = arith.index_cast %1 : i32 to index
      %c0_11 = arith.constant 0 : index
      %27 = vector.load %arg9[%26, %c0_11] : memref<128x128xbf16, #tpu.memory_space<vmem>>, vector<128x128xbf16>
      tpu.vector_store %arg9[%26, %c0_11], %25 {strides = array<i32>} : memref<128x128xbf16, #tpu.memory_space<vmem>>, vector<128x128xbf16>,
    } else {
    }
    %c1_i32 = arith.constant 1 : i32
    %10 = arith.cmpi eq, %arg0, %c1_i32 : i32
    %11 = arith.extui %10 : i1 to i32
    %c0_i32_2 = arith.constant 0 : i32
    %12 = arith.cmpi ne, %11, %c0_i32_2 : i32
    scf.if %12 {
      %c0_3 = arith.constant 0 : index
      %c0_4 = arith.constant 0 : index
      %13 = vector.load %arg9[%c0_3, %c0_4] : memref<128x128xbf16, #tpu.memory_space<vmem>>, vector<128x128xbf16>
      %cst = arith.constant dense<0.000000e+00> : vector<128x128xf32>
      %14 = tpu.matmul %4, %13, %cst {dimension_numbers = #tpu.dot_dimension_numbers<[1], [0], [0], [1], [0, 0, 1, 1], [], []>} : vector<128x128xbf16>, vector<128x128xbf16>, vector<128x128xf32> -> vector<128x128xf32>
      %15 = vector.broadcast %6 : vector<128x1xf32> to vector<128x128xf32>
      %16 = arith.mulf %14, %15 : vector<128x128xf32>
      %c0_5 = arith.constant 0 : index
      %c0_6 = arith.constant 0 : index
      %17 = vector.load %arg7[%c0_5, %c0_6] : memref<1x128xf32, #tpu.memory_space<vmem>>, vector<1x128xf32>
      %18 = vector.broadcast %17 : vector<1x128xf32> to vector<128x128xf32>
      %19 = arith.addf %16, %18 : vector<128x128xf32>
      %c0_7 = arith.constant 0 : index
      %c0_8 = arith.constant 0 : index
      %20 = vector.load %arg8[%c0_7, %c0_8] : memref<128x128xf32, #tpu.memory_space<vmem>>, vector<128x128xf32>
      tpu.vector_store %arg8[%c0_7, %c0_8], %19 {strides = array<i32>} : memref<128x128xf32, #tpu.memory_space<vmem>>, vector<128x128xf32>,
    } else {
    }
    return
  }
  func.func @transform_0(%arg0: i32, %arg1: i32) -> (i32, i32) {
    %c0_i32 = arith.constant 0 : i32
    %c0_i32_0 = arith.constant 0 : i32
    %c0_i32_1 = arith.constant 0 : i32
    return %c0_i32, %c0_i32_0 : i32, i32
  }
  func.func @transform_1(%arg0: i32, %arg1: i32) -> (i32, i32) {
    %c0_i32 = arith.constant 0 : i32
    %c0_i32_0 = arith.constant 0 : i32
    %c0_i32_1 = arith.constant 0 : i32
    return %c0_i32, %c0_i32_0 : i32, i32
  }
  func.func @transform_2(%arg0: i32, %arg1: i32) -> (i32, i32) {
    %c0_i32 = arith.constant 0 : i32
    %c0_i32_0 = arith.constant 0 : i32
    %c0_i32_1 = arith.constant 0 : i32
    return %c0_i32, %c0_i32_0 : i32, i32
  }
  func.func @transform_3(%arg0: i32, %arg1: i32) -> (i32, i32) {
    %c0_i32 = arith.constant 0 : i32
    %c0_i32_0 = arith.constant 0 : i32
    %c0_i32_1 = arith.constant 0 : i32
    return %c0_i32, %c0_i32_0 : i32, i32
  }
  func.func @transform_4(%arg0: i32, %arg1: i32) -> (i32, i32) {
    %c0_i32 = arith.constant 0 : i32
    %c0_i32_0 = arith.constant 0 : i32
    %c0_i32_1 = arith.constant 0 : i32
    return %c0_i32, %c0_i32_0 : i32, i32
  }
  func.func @transform_5(%arg0: i32, %arg1: i32) -> (i32, i32) {
    %c0_i32 = arith.constant 0 : i32
    %c0_i32_0 = arith.constant 0 : i32
    %c0_i32_1 = arith.constant 0 : i32
    return %c0_i32, %c0_i32_0 : i32, i32
  }
  func.func @transform_6(%arg0: i32, %arg1: i32) -> (i32, i32) {
    %0 = arith.muli %arg1, %arg0 : i32
    %c0_i32 = arith.constant 0 : i32
    %c0_i32_0 = arith.constant 0 : i32
    return %0, %c0_i32 : i32, i32
  }
}

</mosaic_0001>

<llo_original>
// kernel: tpu_custom_call.1
$region0: #{tpu_custom_call.1}
  #allocation0 [shape = 'u32[]', space=smem, size = 0x4, offset = 0x4, fixed_abs, tag = 'smem constant byte address 0x4 - core index']
  #allocation1 [shape = 'u32[144,128]{1,0:T(1,128)}', space=vmem, size = 0x12000, scoped, tag = 'internal scratch']
  #allocation2 [shape = 'bf16[128,128]{1,0:T(16,128)(2,1)}', space=vmem, size = 0x8000, scoped, tag = 'scratch operand']
  %s0 = inlined_call_operand.hbm [shape: s8[128,128], index: 0, kind: input, shape index: {}]
  %s1 = inlined_call_operand.vmem [shape: f32[128,1], index: 1, kind: input, shape index: {}]
  %s2 = inlined_call_operand.vmem [shape: bf16[128,128], index: 2, kind: input, shape index: {}]
  %s3 = inlined_call_operand.vmem [shape: f32[1,128], index: 3, kind: input, shape index: {}]
  %s4 = inlined_call_operand.vmem [shape: bf16[128,128], index: 4, kind: input, shape index: {}]
  %s5 = inlined_call_operand.vmem [shape: f32[1,128], index: 5, kind: input, shape index: {}]
  %s6 = inlined_call_operand.hbm [shape: f32[128,128], index: 6, kind: output, shape index: {}]
  %s7 = sld [smem:[#allocation0]]
  $region69: #{tpu_custom_call.1} parent=0
    _
  %s9 = ssub.s32 1, %s7
  %s10 = scalar_select 0, %s9, %s7
  $region1: #{tpu_custom_call.1} parent=0
    #allocation3 [shape = 'u8[16384]{0}', space=vmem, size = 0x4000, scoped, tag = 'input window, operand 0, single buffered']
    #allocation4 [shape = 's32[2]{0}', space=sflag, size = 0x8, scoped, tag = 'scoped memory for tpu_custom_call.1']
    #allocation5 [shape = 's32[2]{0}', space=sflag, size = 0x8, scoped, tag = 'scoped memory for tpu_custom_call.1']
    #allocation6 [shape = 'u8[131072]{0}', space=vmem, size = 0x20000, scoped, tag = 'output window, operand 0']
    %11 = vsyncpa [#allocation4], 0
    %12 = vsyncpa [#allocation5], 0
    %s13 = scalar_lea.sflag [#allocation5], 1
    %14 = vsyncpa %s13, 0
    loop: start=0, step=1, limit=4
    $region2: #{tpu_custom_call.1} parent=1 // loop_pre_header
      _
    $region3: #{tpu_custom_call.1} parent=1 // loop_header
      %s16 = sphi 0, %s20
      %p17 = scmp.ge.s32.totalorder %s16, 4
      %s23 = sphi 0, %s35
      %s24 = sphi 0, %s31
      %s25 = sphi 0, %s23
      %s26 = sphi 0, %s24
      %s27 = sphi 0, %s25
      %s28 = sphi 0, %s26
      %s36 = sphi 0, %s36
      %s38 = sphi 0, %s36
      %s39 = sphi 0, %s38
      %s53 = sphi 0, %s39
      %s57 = sphi 0, %s57
      %s59 = sphi 0, %s57
      %s60 = sphi 0, %s59
      %s74 = sphi 0, %s60
      %s78 = sphi 0, %s78
      %s80 = sphi 0, %s78
      %s81 = sphi 0, %s80
      %s95 = sphi 0, %s81
      %s99 = sphi 0, %s99
      %s101 = sphi 0, %s99
      %s102 = sphi 0, %s101
      %s116 = sphi 0, %s102
      %s120 = sphi 0, %s120
      %s122 = sphi 0, %s120
      %s123 = sphi 0, %s122
      %s137 = sphi 0, %s123
      %s141 = sphi 0, %s141
      %s143 = sphi 0, %s141
      %s144 = sphi 0, %s143
      %s158 = sphi 0, %s144
      %s166 = sphi 0, %s168
      %s169 = sphi 0, %s166
      %s170 = sphi 0, %s169
      %s186 = sphi 0, %s170
    $region4: #{tpu_custom_call.1} parent=1 // loop_header_branch
      %19 = sbr.rel (%p17) target = $region8
    $region5: #{tpu_custom_call.1} parent=1 // loop_body
      %s21 = ssub.s32 %s16, 1
      %s22 = ssub.s32 %s16, 2
      %s29 = sadd.s32 1, %s24
      %p30 = scmp.ge.s32.totalorder %s29, 1
      %s31 = scalar_select %p30, 0, %s29
      %s32 = sadd.s32 1, %s23
      %s33 = scalar_select %p30, %s32, %s23
      %p34 = scmp.ge.s32.totalorder %s33, 2
      %s35 = scalar_select %p34, 0, %s33
      %s37 = sadd.s32 %s36, 1
      %p40 = scmp.eq.s32.totalorder %s16, 1
      %p41 = scmp.ne.s32.totalorder %s36, %s38
      %p42 = scmp.eq.s32.totalorder %s16, 0
      %p43 = por %p41, %p42
      %p44 = scmp.ne.s32.totalorder %s36, %s38
      %p45 = scmp.eq.s32.totalorder %s21, 1
      %p46 = por %p44, %p45
      %p47 = scmp.ne.s32.totalorder %s38, %s39
      %p48 = scmp.eq.s32.totalorder %s21, 0
      %p49 = por %p47, %p48
      %p50 = scmp.ne.s32.totalorder %s38, %s39
      %p51 = scmp.eq.s32.totalorder %s22, 1
      %p52 = por %p50, %p51
      %p54 = scmp.ne.s32.totalorder %s39, %s53
      %p55 = scmp.eq.s32.totalorder %s22, 0
      %p56 = por %p54, %p55
      %s58 = sadd.s32 %s57, 1
      %p61 = scmp.eq.s32.totalorder %s16, 1
      %p62 = scmp.ne.s32.totalorder %s57, %s59
      %p63 = scmp.eq.s32.totalorder %s16, 0
      %p64 = por %p62, %p63
      %p65 = scmp.ne.s32.totalorder %s57, %s59
      %p66 = scmp.eq.s32.totalorder %s21, 1
      %p67 = por %p65, %p66
      %p68 = scmp.ne.s32.totalorder %s59, %s60
      %p69 = scmp.eq.s32.totalorder %s21, 0
      %p70 = por %p68, %p69
      %p71 = scmp.ne.s32.totalorder %s59, %s60
      %p72 = scmp.eq.s32.totalorder %s22, 1
      %p73 = por %p71, %p72
      %p75 = scmp.ne.s32.totalorder %s60, %s74
      %p76 = scmp.eq.s32.totalorder %s22, 0
      %p77 = por %p75, %p76
      %s79 = sadd.s32 %s78, 1
      %p82 = scmp.eq.s32.totalorder %s16, 1
      %p83 = scmp.ne.s32.totalorder %s78, %s80
      %p84 = scmp.eq.s32.totalorder %s16, 0
      %p85 = por %p83, %p84
      %p86 = scmp.ne.s32.totalorder %s78, %s80
      %p87 = scmp.eq.s32.totalorder %s21, 1
      %p88 = por %p86, %p87
      %p89 = scmp.ne.s32.totalorder %s80, %s81
      %p90 = scmp.eq.s32.totalorder %s21, 0
      %p91 = por %p89, %p90
      %p92 = scmp.ne.s32.totalorder %s80, %s81
      %p93 = scmp.eq.s32.totalorder %s22, 1
      %p94 = por %p92, %p93
      %p96 = scmp.ne.s32.totalorder %s81, %s95
      %p97 = scmp.eq.s32.totalorder %s22, 0
      %p98 = por %p96, %p97
      %s100 = sadd.s32 %s99, 1
      %p103 = scmp.eq.s32.totalorder %s16, 1
      %p104 = scmp.ne.s32.totalorder %s99, %s101
      %p105 = scmp.eq.s32.totalorder %s16, 0
      %p106 = por %p104, %p105
      %p107 = scmp.ne.s32.totalorder %s99, %s101
      %p108 = scmp.eq.s32.totalorder %s21, 1
      %p109 = por %p107, %p108
      %p110 = scmp.ne.s32.totalorder %s101, %s102
      %p111 = scmp.eq.s32.totalorder %s21, 0
      %p112 = por %p110, %p111
      %p113 = scmp.ne.s32.totalorder %s101, %s102
      %p114 = scmp.eq.s32.totalorder %s22, 1
      %p115 = por %p113, %p114
      %p117 = scmp.ne.s32.totalorder %s102, %s116
      %p118 = scmp.eq.s32.totalorder %s22, 0
      %p119 = por %p117, %p118
      %s121 = sadd.s32 %s120, 1
      %p124 = scmp.eq.s32.totalorder %s16, 1
      %p125 = scmp.ne.s32.totalorder %s120, %s122
      %p126 = scmp.eq.s32.totalorder %s16, 0
      %p127 = por %p125, %p126
      %p128 = scmp.ne.s32.totalorder %s120, %s122
      %p129 = scmp.eq.s32.totalorder %s21, 1
      %p130 = por %p128, %p129
      %p131 = scmp.ne.s32.totalorder %s122, %s123
      %p132 = scmp.eq.s32.totalorder %s21, 0
      %p133 = por %p131, %p132
      %p134 = scmp.ne.s32.totalorder %s122, %s123
      %p135 = scmp.eq.s32.totalorder %s22, 1
      %p136 = por %p134, %p135
      %p138 = scmp.ne.s32.totalorder %s123, %s137
      %p139 = scmp.eq.s32.totalorder %s22, 0
      %p140 = por %p138, %p139
      %s142 = sadd.s32 %s141, 1
      %p145 = scmp.eq.s32.totalorder %s16, 1
      %p146 = scmp.ne.s32.totalorder %s141, %s143
      %p147 = scmp.eq.s32.totalorder %s16, 0
      %p148 = por %p146, %p147
      %p149 = scmp.ne.s32.totalorder %s141, %s143
      %p150 = scmp.eq.s32.totalorder %s21, 1
      %p151 = por %p149, %p150
      %p152 = scmp.ne.s32.totalorder %s143, %s144
      %p153 = scmp.eq.s32.totalorder %s21, 0
      %p154 = por %p152, %p153
      %p155 = scmp.ne.s32.totalorder %s143, %s144
      %p156 = scmp.eq.s32.totalorder %s22, 1
      %p157 = por %p155, %p156
      %p159 = scmp.ne.s32.totalorder %s144, %s158
      %p160 = scmp.eq.s32.totalorder %s22, 0
      %p161 = por %p159, %p160
      %s162 = smul.u32 %s24, %s23
      %s163 = smul.u32 %s31, %s35
      %s164 = ssub.s32 %s162, %s163
      %p165 = scmp.eq.s32.totalorder %s164, 0
      %s167 = sadd.s32 %s166, 1
      %s168 = scalar_select %p165, %s166, %s167
      %p171 = pneg %p165
      %p172 = scmp.eq.s32.totalorder %s16, 1
      %p173 = por %p171, %p172
      %p174 = scmp.ne.s32.totalorder %s166, %s169
      %p175 = scmp.eq.s32.totalorder %s16, 0
      %p176 = por %p174, %p175
      %p177 = scmp.ne.s32.totalorder %s166, %s169
      %p178 = scmp.eq.s32.totalorder %s21, 1
      %p179 = por %p177, %p178
      %p180 = scmp.ne.s32.totalorder %s169, %s170
      %p181 = scmp.eq.s32.totalorder %s21, 0
      %p182 = por %p180, %p181
      %p183 = scmp.ne.s32.totalorder %s169, %s170
      %p184 = scmp.eq.s32.totalorder %s22, 1
      %p185 = por %p183, %p184
      %p187 = scmp.ne.s32.totalorder %s170, %s186
      %p188 = scmp.eq.s32.totalorder %s22, 0
      %p189 = por %p187, %p188
      %p190 = scmp.le.s32.totalorder 1, %s16
      %p191 = scmp.lt.s32.totalorder %s16, 3
      %p192 = pnand %p190, %p191
      %p193 = pneg %p192
      // Predicated region
      $region9: #{tpu_custom_call.1} parent=5 // pred_check
        _
      $region10: #{tpu_custom_call.1} parent=5 // pred_check_branch
        %195 = sbr.rel (%p192) target = $region12
      $region11: #{tpu_custom_call.1} parent=5 // pred_region
        %s196 = ssub.s32 %s16, 1
        // Predicated region
        $region13: #{tpu_custom_call.1} parent=11 // pred_check
          %p197 = pneg %p49
        $region14: #{tpu_custom_call.1} parent=11 // pred_check_branch
          %199 = sbr.rel (%p197) target = $region16
        $region15: #{tpu_custom_call.1} parent=11 // pred_region
          %s201 = ssub.s32 512, 512
          %202 = vsyncadd [#allocation4], %s201
          %s203 = sshll.u32 [#allocation3], 4
          %s204 = int_to_ptr.vmem [resolvable:$true] %s203
          %209 = dma.hbm_to_vmem [thread:$0]  %s0, 512, %s204, [#allocation4], 128, 128, 8
        $region16: #{tpu_custom_call.1} parent=11 // pred_fallthru
          _
        // Predicated region
        $region17: #{tpu_custom_call.1} parent=11 // pred_check
          %p210 = pneg %p70
        $region18: #{tpu_custom_call.1} parent=11 // pred_check_branch
          %212 = sbr.rel (%p210) target = $region20
        $region19: #{tpu_custom_call.1} parent=11 // pred_region
          _
        $region20: #{tpu_custom_call.1} parent=11 // pred_fallthru
          _
        // Predicated region
        $region21: #{tpu_custom_call.1} parent=11 // pred_check
          %p213 = pneg %p91
        $region22: #{tpu_custom_call.1} parent=11 // pred_check_branch
          %215 = sbr.rel (%p213) target = $region24
        $region23: #{tpu_custom_call.1} parent=11 // pred_region
          _
        $region24: #{tpu_custom_call.1} parent=11 // pred_fallthru
          _
        // Predicated region
        $region25: #{tpu_custom_call.1} parent=11 // pred_check
          %p216 = pneg %p112
        $region26: #{tpu_custom_call.1} parent=11 // pred_check_branch
          %218 = sbr.rel (%p216) target = $region28
        $region27: #{tpu_custom_call.1} parent=11 // pred_region
          _
        $region28: #{tpu_custom_call.1} parent=11 // pred_fallthru
          _
        // Predicated region
        $region29: #{tpu_custom_call.1} parent=11 // pred_check
          %p219 = pneg %p133
        $region30: #{tpu_custom_call.1} parent=11 // pred_check_branch
          %221 = sbr.rel (%p219) target = $region32
        $region31: #{tpu_custom_call.1} parent=11 // pred_region
          _
        $region32: #{tpu_custom_call.1} parent=11 // pred_fallthru
          _
        // Predicated region
        $region33: #{tpu_custom_call.1} parent=11 // pred_check
          %p222 = pneg %p154
        $region34: #{tpu_custom_call.1} parent=11 // pred_check_branch
          %224 = sbr.rel (%p222) target = $region36
        $region35: #{tpu_custom_call.1} parent=11 // pred_region
          _
        $region36: #{tpu_custom_call.1} parent=11 // pred_fallthru
          _
      $region12: #{tpu_custom_call.1} parent=5 // pred_fallthru
        _
      %p225 = scmp.lt.s32.totalorder %s16, 2
      // Predicated region
      $region37: #{tpu_custom_call.1} parent=5 // pred_check
        %p226 = pneg %p225
      $region38: #{tpu_custom_call.1} parent=5 // pred_check_branch
        %228 = sbr.rel (%p226) target = $region40
      $region39: #{tpu_custom_call.1} parent=5 // pred_region
        _
      $region40: #{tpu_custom_call.1} parent=5 // pred_fallthru
        _
      %p229 = scmp.le.s32.totalorder 1, %s16
      %p230 = scmp.lt.s32.totalorder %s16, 3
      %p231 = pnand %p229, %p230
      %p232 = pneg %p231
      // Predicated region
      $region41: #{tpu_custom_call.1} parent=5 // pred_check
        _
      $region42: #{tpu_custom_call.1} parent=5 // pred_check_branch
        %234 = sbr.rel (%p231) target = $region44
      $region43: #{tpu_custom_call.1} parent=5 // pred_region
        %s235 = ssub.s32 %s16, 1
        // Predicated region
        $region45: #{tpu_custom_call.1} parent=43 // pred_check
          %p236 = pneg %p49
        $region46: #{tpu_custom_call.1} parent=43 // pred_check_branch
          %238 = sbr.rel (%p236) target = $region48
        $region47: #{tpu_custom_call.1} parent=43 // pred_region
          %239 = dma.done [#allocation4], 512
        $region48: #{tpu_custom_call.1} parent=43 // pred_fallthru
          _
        %p240 = pneg %p49
        %p241 = pneg %p46
        %p242 = pneg %p70
        %p243 = pneg %p67
        %p244 = pneg %p91
        %p245 = pneg %p88
        %p246 = pneg %p112
        %p247 = pneg %p109
        %p248 = pneg %p133
        %p249 = pneg %p130
        %p250 = pneg %p154
        %p251 = pneg %p151
        %p252 = pneg %p182
        %p253 = pneg %p179
        %s254 = sand.u32 %s169, 1
        %s255 = scalar_lea.sflag [#allocation5], %s254
        %s256 = sand.u32 %s169, 1
        %s257 = smul.addr %s256, 128
        %s258 = scalar_lea.vmem [#allocation6], %s257
        %s259 = smul.u32 %s26, %s25
        %s260 = smul.u32 16, %s259
        %s262 = smul.u32 %s26, 128
        %s263 = sshra.s32 %s262, 5
        %s264 = sand.u32 %s262, 31
        %s265 = smul.addr %s263, 8
        %s266 = scalar_lea.vmem [#allocation3], %s265
        %v267 = vld [vmem:[%s266] sm:$0xff]
        %v268 = vld [vmem:[%s266 + $0x8] sm:$0xff]
        %v269 = vld [vmem:[%s266 + $0x10] sm:$0xff]
        %v270 = vld [vmem:[%s266 + $0x18] sm:$0xff]
        %v271 = vunpack.c.l.s8.bf16 %v267
        %v272 = vunpack.c.h.s8.bf16 %v267
        %v273 = vunpack.c.l.s8.bf16 %v268
        %v274 = vunpack.c.h.s8.bf16 %v268
        %v275 = vunpack.c.l.s8.bf16 %v269
        %v276 = vunpack.c.h.s8.bf16 %v269
        %v277 = vunpack.c.l.s8.bf16 %v270
        %v278 = vunpack.c.h.s8.bf16 %v270
        %s279 = scalar_lea.vmem %s1, %s262
        %v280 = vld [vmem:[%s279] sm:$0xff]
        %v281 = vld [vmem:[%s279 + $0x8] sm:$0xff]
        %v282 = vld [vmem:[%s279 + $0x10] sm:$0xff]
        %v283 = vld [vmem:[%s279 + $0x18] sm:$0xff]
        %v284 = vld [vmem:[%s279 + $0x20] sm:$0xff]
        %v285 = vld [vmem:[%s279 + $0x28] sm:$0xff]
        %v286 = vld [vmem:[%s279 + $0x30] sm:$0xff]
        %v287 = vld [vmem:[%s279 + $0x38] sm:$0xff]
        %v288 = vld [vmem:[%s279 + $0x40] sm:$0xff]
        %v289 = vld [vmem:[%s279 + $0x48] sm:$0xff]
        %v290 = vld [vmem:[%s279 + $0x50] sm:$0xff]
        %v291 = vld [vmem:[%s279 + $0x58] sm:$0xff]
        %v292 = vld [vmem:[%s279 + $0x60] sm:$0xff]
        %v293 = vld [vmem:[%s279 + $0x68] sm:$0xff]
        %v294 = vld [vmem:[%s279 + $0x70] sm:$0xff]
        %v295 = vld [vmem:[%s279 + $0x78] sm:$0xff]
        %p296 = scmp.eq.s32.totalorder %s25, 0
        // Predicated region
        $region49: #{tpu_custom_call.1} parent=43 // pred_check
          %p297 = pneg %p296
        $region50: #{tpu_custom_call.1} parent=43 // pred_check_branch
          %299 = sbr.rel (%p297) target = $region52
        $region51: #{tpu_custom_call.1} parent=43 // pred_region
          %v300 = vld [vmem:[%s2] sm:$0xf]
          %v301 = vld [vmem:[%s2 + $0x4] sm:$0xf]
          %v302 = vld [vmem:[%s2 + $0x8] sm:$0xf]
          %v303 = vld [vmem:[%s2 + $0xc] sm:$0xf]
          %v304 = vld [vmem:[%s2 + $0x10] sm:$0xf]
          %v305 = vld [vmem:[%s2 + $0x14] sm:$0xf]
          %v306 = vld [vmem:[%s2 + $0x18] sm:$0xf]
          %v307 = vld [vmem:[%s2 + $0x1c] sm:$0xf]
          %v308 = vld [vmem:[%s2 + $0x20] sm:$0xf]
          %v309 = vld [vmem:[%s2 + $0x24] sm:$0xf]
          %v310 = vld [vmem:[%s2 + $0x28] sm:$0xf]
          %v311 = vld [vmem:[%s2 + $0x2c] sm:$0xf]
          %v312 = vld [vmem:[%s2 + $0x30] sm:$0xf]
          %v313 = vld [vmem:[%s2 + $0x34] sm:$0xf]
          %v314 = vld [vmem:[%s2 + $0x38] sm:$0xf]
          %v315 = vld [vmem:[%s2 + $0x3c] sm:$0xf]
          %v332 = vunpack.c.l.b16 %v300
          %v333 = vunpack.c.l.b16 %v301
          %v334 = vunpack.c.l.b16 %v302
          %v335 = vunpack.c.l.b16 %v303
          %v336 = vunpack.c.l.b16 %v304
          %v337 = vunpack.c.l.b16 %v305
          %v338 = vunpack.c.l.b16 %v306
          %v339 = vunpack.c.l.b16 %v307
          %v340 = vunpack.c.l.b16 %v308
          %v341 = vunpack.c.l.b16 %v309
          %v342 = vunpack.c.l.b16 %v310
          %v343 = vunpack.c.l.b16 %v311
          %v344 = vunpack.c.l.b16 %v312
          %v345 = vunpack.c.l.b16 %v313
          %v346 = vunpack.c.l.b16 %v314
          %v347 = vunpack.c.l.b16 %v315
          %v348 = vpack.c.b16 %v333, %v332
          %v349 = vpack.c.b16 %v335, %v334
          %v350 = vpack.c.b16 %v337, %v336
          %v351 = vpack.c.b16 %v339, %v338
          %v352 = vpack.c.b16 %v341, %v340
          %v353 = vpack.c.b16 %v343, %v342
          %v354 = vpack.c.b16 %v345, %v344
          %v355 = vpack.c.b16 %v347, %v346
          %364 = vmatprep.subr.bf16.mxu0 0
          %365 = vmatpush1.bf16.msra.mxu0 %v348
          %366 = vmatprep.subr.bf16.mxu0 0
          %367 = vmatpush1.bf16.msra.mxu0 %v349
          %368 = vmatprep.subr.bf16.mxu0 0
          %369 = vmatpush1.bf16.msra.mxu0 %v350
          %370 = vmatprep.subr.bf16.mxu0 0
          %371 = vmatpush1.bf16.msra.mxu0 %v351
          %372 = vmatprep.subr.bf16.mxu0 0
          %373 = vmatpush1.bf16.msra.mxu0 %v352
          %374 = vmatprep.subr.bf16.mxu0 0
          %375 = vmatpush1.bf16.msra.mxu0 %v353
          %376 = vmatprep.subr.bf16.mxu0 0
          %377 = vmatpush1.bf16.msra.mxu0 %v354
          %378 = vmatprep.subr.bf16.mxu0 0
          %379 = vmatpush1.bf16.msra.mxu0 %v355
          %380 = vmatprep.subr.bf16.mxu0 0
          %381 = vmatpush1.bf16.msra.mxu0 0
          %382 = vmatprep.subr.bf16.mxu0 0
          %383 = vmatpush1.bf16.msra.mxu0 0
          %384 = vmatprep.subr.bf16.mxu0 0
          %385 = vmatpush1.bf16.msra.mxu0 0
          %386 = vmatprep.subr.bf16.mxu0 0
          %387 = vmatpush1.bf16.msra.mxu0 0
          %388 = vmatprep.subr.bf16.mxu0 0
          %389 = vmatpush1.bf16.msra.mxu0 0
          %390 = vmatprep.subr.bf16.mxu0 0
          %391 = vmatpush1.bf16.msra.mxu0 0
          %392 = vmatprep.subr.bf16.mxu0 0
          %393 = vmatpush1.bf16.msra.mxu0 0
          %394 = vmatprep.subr.bf16.mxu0 0
          %395 = vmatpush1.bf16.msra.mxu0 0
          %396 = vmatprep.mubr.bf16.mxu0 0
          %397 = vmatmul.mubr.bf16.gmra.mrb[0].mxu0 %v271
          %v398 = vpop.f32.mrb[0].mxu0
          %v399 = vadd.f32 0.0, %v398
          %v400 = vpop.f32.mrb[0].mxu0
          %v401 = vpop.f32.mrb[0].mxu0
          %v402 = vadd.f32 0.0, %v401
          %v403 = vpop.f32.mrb[0].mxu0
          %404 = vmatprep.mubr.bf16.mxu0 0
          %405 = vmatmul.mubr.bf16.gmra.mrb[0].mxu0 %v272
          %v406 = vpop.f32.mrb[0].mxu0
          %v407 = vadd.f32 0.0, %v406
          %v408 = vpop.f32.mrb[0].mxu0
          %v409 = vpop.f32.mrb[0].mxu0
          %v410 = vadd.f32 0.0, %v409
          %v411 = vpop.f32.mrb[0].mxu0
          %412 = vmatprep.mubr.bf16.mxu0 0
          %413 = vmatmul.mubr.bf16.gmra.mrb[0].mxu0 %v273
          %v414 = vpop.f32.mrb[0].mxu0
          %v415 = vadd.f32 0.0, %v414
          %v416 = vpop.f32.mrb[0].mxu0
          %v417 = vpop.f32.mrb[0].mxu0
          %v418 = vadd.f32 0.0, %v417
          %v419 = vpop.f32.mrb[0].mxu0
          %420 = vmatprep.mubr.bf16.mxu0 0
          %421 = vmatmul.mubr.bf16.gmra.mrb[0].mxu0 %v274
          %v422 = vpop.f32.mrb[0].mxu0
          %v423 = vadd.f32 0.0, %v422
          %v424 = vpop.f32.mrb[0].mxu0
          %v425 = vpop.f32.mrb[0].mxu0
          %v426 = vadd.f32 0.0, %v425
          %v427 = vpop.f32.mrb[0].mxu0
          %428 = vmatprep.mubr.bf16.mxu0 0
          %429 = vmatmul.mubr.bf16.gmra.mrb[0].mxu0 %v275
          %v430 = vpop.f32.mrb[0].mxu0
          %v431 = vadd.f32 0.0, %v430
          %v432 = vpop.f32.mrb[0].mxu0
          %v433 = vpop.f32.mrb[0].mxu0
          %v434 = vadd.f32 0.0, %v433
          %v435 = vpop.f32.mrb[0].mxu0
          %436 = vmatprep.mubr.bf16.mxu0 0
          %437 = vmatmul.mubr.bf16.gmra.mrb[0].mxu0 %v276
          %v438 = vpop.f32.mrb[0].mxu0
          %v439 = vadd.f32 0.0, %v438
          %v440 = vpop.f32.mrb[0].mxu0
          %v441 = vpop.f32.mrb[0].mxu0
          %v442 = vadd.f32 0.0, %v441
          %v443 = vpop.f32.mrb[0].mxu0
          %444 = vmatprep.mubr.bf16.mxu0 0
          %445 = vmatmul.mubr.bf16.gmra.mrb[0].mxu0 %v277
          %v446 = vpop.f32.mrb[0].mxu0
          %v447 = vadd.f32 0.0, %v446
          %v448 = vpop.f32.mrb[0].mxu0
          %v449 = vpop.f32.mrb[0].mxu0
          %v450 = vadd.f32 0.0, %v449
          %v451 = vpop.f32.mrb[0].mxu0
          %452 = vmatprep.mubr.bf16.mxu0 0
          %453 = vmatmul.mubr.bf16.gmra.mrb[0].mxu0 %v278
          %v454 = vpop.f32.mrb[0].mxu0
          %v455 = vadd.f32 0.0, %v454
          %v456 = vpop.f32.mrb[0].mxu0
          %v457 = vpop.f32.mrb[0].mxu0
          %v458 = vadd.f32 0.0, %v457
          %v459 = vpop.f32.mrb[0].mxu0
          %460 = vdwg.mxu0
          %462 = vset.pattern.permute.xlu0 0
          %463 = vperm.xlu0 %462, %v280
          %v464 = vpop.permute.xlu0 %463
          %467 = vset.pattern.permute.xlu0 0
          %468 = vperm.xlu0 %467, %v281
          %v469 = vpop.permute.xlu0 %468
          %472 = vset.pattern.permute.xlu0 0
          %473 = vperm.xlu0 %472, %v282
          %v474 = vpop.permute.xlu0 %473
          %477 = vset.pattern.permute.xlu0 0
          %478 = vperm.xlu0 %477, %v283
          %v479 = vpop.permute.xlu0 %478
          %482 = vset.pattern.permute.xlu0 0
          %483 = vperm.xlu0 %482, %v284
          %v484 = vpop.permute.xlu0 %483
          %487 = vset.pattern.permute.xlu0 0
          %488 = vperm.xlu0 %487, %v285
          %v489 = vpop.permute.xlu0 %488
          %492 = vset.pattern.permute.xlu0 0
          %493 = vperm.xlu0 %492, %v286
          %v494 = vpop.permute.xlu0 %493
          %497 = vset.pattern.permute.xlu0 0
          %498 = vperm.xlu0 %497, %v287
          %v499 = vpop.permute.xlu0 %498
          %502 = vset.pattern.permute.xlu0 0
          %503 = vperm.xlu0 %502, %v288
          %v504 = vpop.permute.xlu0 %503
          %507 = vset.pattern.permute.xlu0 0
          %508 = vperm.xlu0 %507, %v289
          %v509 = vpop.permute.xlu0 %508
          %512 = vset.pattern.permute.xlu0 0
          %513 = vperm.xlu0 %512, %v290
          %v514 = vpop.permute.xlu0 %513
          %517 = vset.pattern.permute.xlu0 0
          %518 = vperm.xlu0 %517, %v291
          %v519 = vpop.permute.xlu0 %518
          %522 = vset.pattern.permute.xlu0 0
          %523 = vperm.xlu0 %522, %v292
          %v524 = vpop.permute.xlu0 %523
          %527 = vset.pattern.permute.xlu0 0
          %528 = vperm.xlu0 %527, %v293
          %v529 = vpop.permute.xlu0 %528
          %532 = vset.pattern.permute.xlu0 0
          %533 = vperm.xlu0 %532, %v294
          %v534 = vpop.permute.xlu0 %533
          %537 = vset.pattern.permute.xlu0 0
          %538 = vperm.xlu0 %537, %v295
          %v539 = vpop.permute.xlu0 %538
          %v541 = vmul.f32 %v399, %v464
          %v542 = vmul.f32 %v402, %v469
          %v543 = vmul.f32 %v407, %v474
          %v544 = vmul.f32 %v410, %v479
          %v545 = vmul.f32 %v415, %v484
          %v546 = vmul.f32 %v418, %v489
          %v547 = vmul.f32 %v423, %v494
          %v548 = vmul.f32 %v426, %v499
          %v549 = vmul.f32 %v431, %v504
          %v550 = vmul.f32 %v434, %v509
          %v551 = vmul.f32 %v439, %v514
          %v552 = vmul.f32 %v442, %v519
          %v553 = vmul.f32 %v447, %v524
          %v554 = vmul.f32 %v450, %v529
          %v555 = vmul.f32 %v455, %v534
          %v556 = vmul.f32 %v458, %v539
          %v557 = vld [vmem:[%s3] sm:$0x1]
          %v559 = vlaneseq
          %v560 = vshrl.u32 %v559, 7
          %v561 = vsub.s32 0, %v560
          %v562 = vrot.slane %v557, %v561
          %v564 = vadd.f32 %v541, %v562
          %v565 = vadd.f32 %v542, %v562
          %v566 = vadd.f32 %v543, %v562
          %v567 = vadd.f32 %v544, %v562
          %v568 = vadd.f32 %v545, %v562
          %v569 = vadd.f32 %v546, %v562
          %v570 = vadd.f32 %v547, %v562
          %v571 = vadd.f32 %v548, %v562
          %v572 = vadd.f32 %v549, %v562
          %v573 = vadd.f32 %v550, %v562
          %v574 = vadd.f32 %v551, %v562
          %v575 = vadd.f32 %v552, %v562
          %v576 = vadd.f32 %v553, %v562
          %v577 = vadd.f32 %v554, %v562
          %v578 = vadd.f32 %v555, %v562
          %v579 = vadd.f32 %v556, %v562
          %v580 = vmax.f32 %v564, 0.0
          %v581 = vmax.f32 %v565, 0.0
          %v582 = vmax.f32 %v566, 0.0
          %v583 = vmax.f32 %v567, 0.0
          %v584 = vmax.f32 %v568, 0.0
          %v585 = vmax.f32 %v569, 0.0
          %v586 = vmax.f32 %v570, 0.0
          %v587 = vmax.f32 %v571, 0.0
          %v588 = vmax.f32 %v572, 0.0
          %v589 = vmax.f32 %v573, 0.0
          %v590 = vmax.f32 %v574, 0.0
          %v591 = vmax.f32 %v575, 0.0
          %v592 = vmax.f32 %v576, 0.0
          %v593 = vmax.f32 %v577, 0.0
          %v594 = vmax.f32 %v578, 0.0
          %v595 = vmax.f32 %v579, 0.0
          %v596 = vpack.c.bf16 %v581, %v580
          %v597 = vpack.c.bf16 %v583, %v582
          %v598 = vpack.c.bf16 %v585, %v584
          %v599 = vpack.c.bf16 %v587, %v586
          %v600 = vpack.c.bf16 %v589, %v588
          %v601 = vpack.c.bf16 %v591, %v590
          %v602 = vpack.c.bf16 %v593, %v592
          %v603 = vpack.c.bf16 %v595, %v594
          %v604 = vld [vmem:[%s4] sm:$0xf]
          %v605 = vld [vmem:[%s4 + $0x4] sm:$0xf]
          %v606 = vld [vmem:[%s4 + $0x8] sm:$0xf]
          %v607 = vld [vmem:[%s4 + $0xc] sm:$0xf]
          %v608 = vld [vmem:[%s4 + $0x10] sm:$0xf]
          %v609 = vld [vmem:[%s4 + $0x14] sm:$0xf]
          %v610 = vld [vmem:[%s4 + $0x18] sm:$0xf]
          %v611 = vld [vmem:[%s4 + $0x1c] sm:$0xf]
          %v612 = vld [vmem:[%s4 + $0x20] sm:$0xf]
          %v613 = vld [vmem:[%s4 + $0x24] sm:$0xf]
          %v614 = vld [vmem:[%s4 + $0x28] sm:$0xf]
          %v615 = vld [vmem:[%s4 + $0x2c] sm:$0xf]
          %v616 = vld [vmem:[%s4 + $0x30] sm:$0xf]
          %v617 = vld [vmem:[%s4 + $0x34] sm:$0xf]
          %v618 = vld [vmem:[%s4 + $0x38] sm:$0xf]
          %v619 = vld [vmem:[%s4 + $0x3c] sm:$0xf]
          %v636 = vunpack.c.l.b16 %v604
          %v637 = vunpack.c.l.b16 %v605
          %v638 = vunpack.c.l.b16 %v606
          %v639 = vunpack.c.l.b16 %v607
          %v640 = vunpack.c.l.b16 %v608
          %v641 = vunpack.c.l.b16 %v609
          %v642 = vunpack.c.l.b16 %v610
          %v643 = vunpack.c.l.b16 %v611
          %v644 = vunpack.c.l.b16 %v612
          %v645 = vunpack.c.l.b16 %v613
          %v646 = vunpack.c.l.b16 %v614
          %v647 = vunpack.c.l.b16 %v615
          %v648 = vunpack.c.l.b16 %v616
          %v649 = vunpack.c.l.b16 %v617
          %v650 = vunpack.c.l.b16 %v618
          %v651 = vunpack.c.l.b16 %v619
          %v652 = vpack.c.b16 %v637, %v636
          %v653 = vpack.c.b16 %v639, %v638
          %v654 = vpack.c.b16 %v641, %v640
          %v655 = vpack.c.b16 %v643, %v642
          %v656 = vpack.c.b16 %v645, %v644
          %v657 = vpack.c.b16 %v647, %v646
          %v658 = vpack.c.b16 %v649, %v648
          %v659 = vpack.c.b16 %v651, %v650
          %668 = vmatprep.subr.bf16.mxu0 0
          %669 = vmatpush1.bf16.msra.mxu0 %v652
          %670 = vmatprep.subr.bf16.mxu0 0
          %671 = vmatpush1.bf16.msra.mxu0 %v653
          %672 = vmatprep.subr.bf16.mxu0 0
          %673 = vmatpush1.bf16.msra.mxu0 %v654
          %674 = vmatprep.subr.bf16.mxu0 0
          %675 = vmatpush1.bf16.msra.mxu0 %v655
          %676 = vmatprep.subr.bf16.mxu0 0
          %677 = vmatpush1.bf16.msra.mxu0 %v656
          %678 = vmatprep.subr.bf16.mxu0 0
          %679 = vmatpush1.bf16.msra.mxu0 %v657
          %680 = vmatprep.subr.bf16.mxu0 0
          %681 = vmatpush1.bf16.msra.mxu0 %v658
          %682 = vmatprep.subr.bf16.mxu0 0
          %683 = vmatpush1.bf16.msra.mxu0 %v659
          %684 = vmatprep.subr.bf16.mxu0 0
          %685 = vmatpush1.bf16.msra.mxu0 0
          %686 = vmatprep.subr.bf16.mxu0 0
          %687 = vmatpush1.bf16.msra.mxu0 0
          %688 = vmatprep.subr.bf16.mxu0 0
          %689 = vmatpush1.bf16.msra.mxu0 0
          %690 = vmatprep.subr.bf16.mxu0 0
          %691 = vmatpush1.bf16.msra.mxu0 0
          %692 = vmatprep.subr.bf16.mxu0 0
          %693 = vmatpush1.bf16.msra.mxu0 0
          %694 = vmatprep.subr.bf16.mxu0 0
          %695 = vmatpush1.bf16.msra.mxu0 0
          %696 = vmatprep.subr.bf16.mxu0 0
          %697 = vmatpush1.bf16.msra.mxu0 0
          %698 = vmatprep.subr.bf16.mxu0 0
          %699 = vmatpush1.bf16.msra.mxu0 0
          %700 = vmatprep.mubr.bf16.mxu0 0
          %701 = vmatmul.mubr.bf16.gmra.mrb[0].mxu0 %v596
          %v702 = vpop.f32.mrb[0].mxu0
          %v703 = vadd.f32 0.0, %v702
          %v704 = vpop.f32.mrb[0].mxu0
          %v705 = vpop.f32.mrb[0].mxu0
          %v706 = vadd.f32 0.0, %v705
          %v707 = vpop.f32.mrb[0].mxu0
          %708 = vmatprep.mubr.bf16.mxu0 0
          %709 = vmatmul.mubr.bf16.gmra.mrb[0].mxu0 %v597
          %v710 = vpop.f32.mrb[0].mxu0
          %v711 = vadd.f32 0.0, %v710
          %v712 = vpop.f32.mrb[0].mxu0
          %v713 = vpop.f32.mrb[0].mxu0
          %v714 = vadd.f32 0.0, %v713
          %v715 = vpop.f32.mrb[0].mxu0
          %716 = vmatprep.mubr.bf16.mxu0 0
          %717 = vmatmul.mubr.bf16.gmra.mrb[0].mxu0 %v598
          %v718 = vpop.f32.mrb[0].mxu0
          %v719 = vadd.f32 0.0, %v718
          %v720 = vpop.f32.mrb[0].mxu0
          %v721 = vpop.f32.mrb[0].mxu0
          %v722 = vadd.f32 0.0, %v721
          %v723 = vpop.f32.mrb[0].mxu0
          %724 = vmatprep.mubr.bf16.mxu0 0
          %725 = vmatmul.mubr.bf16.gmra.mrb[0].mxu0 %v599
          %v726 = vpop.f32.mrb[0].mxu0
          %v727 = vadd.f32 0.0, %v726
          %v728 = vpop.f32.mrb[0].mxu0
          %v729 = vpop.f32.mrb[0].mxu0
          %v730 = vadd.f32 0.0, %v729
          %v731 = vpop.f32.mrb[0].mxu0
          %732 = vmatprep.mubr.bf16.mxu0 0
          %733 = vmatmul.mubr.bf16.gmra.mrb[0].mxu0 %v600
          %v734 = vpop.f32.mrb[0].mxu0
          %v735 = vadd.f32 0.0, %v734
          %v736 = vpop.f32.mrb[0].mxu0
          %v737 = vpop.f32.mrb[0].mxu0
          %v738 = vadd.f32 0.0, %v737
          %v739 = vpop.f32.mrb[0].mxu0
          %740 = vmatprep.mubr.bf16.mxu0 0
          %741 = vmatmul.mubr.bf16.gmra.mrb[0].mxu0 %v601
          %v742 = vpop.f32.mrb[0].mxu0
          %v743 = vadd.f32 0.0, %v742
          %v744 = vpop.f32.mrb[0].mxu0
          %v745 = vpop.f32.mrb[0].mxu0
          %v746 = vadd.f32 0.0, %v745
          %v747 = vpop.f32.mrb[0].mxu0
          %748 = vmatprep.mubr.bf16.mxu0 0
          %749 = vmatmul.mubr.bf16.gmra.mrb[0].mxu0 %v602
          %v750 = vpop.f32.mrb[0].mxu0
          %v751 = vadd.f32 0.0, %v750
          %v752 = vpop.f32.mrb[0].mxu0
          %v753 = vpop.f32.mrb[0].mxu0
          %v754 = vadd.f32 0.0, %v753
          %v755 = vpop.f32.mrb[0].mxu0
          %756 = vmatprep.mubr.bf16.mxu0 0
          %757 = vmatmul.mubr.bf16.gmra.mrb[0].mxu0 %v603
          %v758 = vpop.f32.mrb[0].mxu0
          %v759 = vadd.f32 0.0, %v758
          %v760 = vpop.f32.mrb[0].mxu0
          %v761 = vpop.f32.mrb[0].mxu0
          %v762 = vadd.f32 0.0, %v761
          %v763 = vpop.f32.mrb[0].mxu0
          %764 = vdwg.mxu0
          %v765 = vpack.c.bf16 %v706, %v703
          %v766 = vpack.c.bf16 %v714, %v711
          %v767 = vpack.c.bf16 %v722, %v719
          %v768 = vpack.c.bf16 %v730, %v727
          %v769 = vpack.c.bf16 %v738, %v735
          %v770 = vpack.c.bf16 %v746, %v743
          %v771 = vpack.c.bf16 %v754, %v751
          %v772 = vpack.c.bf16 %v762, %v759
          %s773 = sshra.s32 %s262, 4
          %s774 = sand.u32 %s262, 15
          %s775 = smul.addr %s773, 8
          %s776 = scalar_lea.vmem [#allocation2], %s775
          %777 = vst [vmem:[%s776] sm:$0xff] %v765
          %778 = vst [vmem:[%s776 + $0x8] sm:$0xff] %v766
          %779 = vst [vmem:[%s776 + $0x10] sm:$0xff] %v767
          %780 = vst [vmem:[%s776 + $0x18] sm:$0xff] %v768
          %781 = vst [vmem:[%s776 + $0x20] sm:$0xff] %v769
          %782 = vst [vmem:[%s776 + $0x28] sm:$0xff] %v770
          %783 = vst [vmem:[%s776 + $0x30] sm:$0xff] %v771
          %784 = vst [vmem:[%s776 + $0x38] sm:$0xff] %v772
        $region52: #{tpu_custom_call.1} parent=43 // pred_fallthru
          _
        %p785 = scmp.eq.s32.totalorder %s25, 1
        // Predicated region
        $region53: #{tpu_custom_call.1} parent=43 // pred_check
          %p786 = pneg %p785
        $region54: #{tpu_custom_call.1} parent=43 // pred_check_branch
          %788 = sbr.rel (%p786) target = $region56
        $region55: #{tpu_custom_call.1} parent=43 // pred_region
          %v789 = vld [vmem:[#allocation2] sm:$0xff]
          %v790 = vld [vmem:[#allocation2 + $0x8] sm:$0xff]
          %v791 = vld [vmem:[#allocation2 + $0x10] sm:$0xff]
          %v792 = vld [vmem:[#allocation2 + $0x18] sm:$0xff]
          %v793 = vld [vmem:[#allocation2 + $0x20] sm:$0xff]
          %v794 = vld [vmem:[#allocation2 + $0x28] sm:$0xff]
          %v795 = vld [vmem:[#allocation2 + $0x30] sm:$0xff]
          %v796 = vld [vmem:[#allocation2 + $0x38] sm:$0xff]
          %797 = vmatprep.subr.bf16.mxu0 0
          %798 = vmatpush1.bf16.msra.mxu0 %v789
          %799 = vmatprep.subr.bf16.mxu0 0
          %800 = vmatpush1.bf16.msra.mxu0 %v790
          %801 = vmatprep.subr.bf16.mxu0 0
          %802 = vmatpush1.bf16.msra.mxu0 %v791
          %803 = vmatprep.subr.bf16.mxu0 0
          %804 = vmatpush1.bf16.msra.mxu0 %v792
          %805 = vmatprep.subr.bf16.mxu0 0
          %806 = vmatpush1.bf16.msra.mxu0 %v793
          %807 = vmatprep.subr.bf16.mxu0 0
          %808 = vmatpush1.bf16.msra.mxu0 %v794
          %809 = vmatprep.subr.bf16.mxu0 0
          %810 = vmatpush1.bf16.msra.mxu0 %v795
          %811 = vmatprep.subr.bf16.mxu0 0
          %812 = vmatpush1.bf16.msra.mxu0 %v796
          %813 = vmatprep.subr.bf16.mxu0 0
          %814 = vmatpush1.bf16.msra.mxu0 0
          %815 = vmatprep.subr.bf16.mxu0 0
          %816 = vmatpush1.bf16.msra.mxu0 0
          %817 = vmatprep.subr.bf16.mxu0 0
          %818 = vmatpush1.bf16.msra.mxu0 0
          %819 = vmatprep.subr.bf16.mxu0 0
          %820 = vmatpush1.bf16.msra.mxu0 0
          %821 = vmatprep.subr.bf16.mxu0 0
          %822 = vmatpush1.bf16.msra.mxu0 0
          %823 = vmatprep.subr.bf16.mxu0 0
          %824 = vmatpush1.bf16.msra.mxu0 0
          %825 = vmatprep.subr.bf16.mxu0 0
          %826 = vmatpush1.bf16.msra.mxu0 0
          %827 = vmatprep.subr.bf16.mxu0 0
          %828 = vmatpush1.bf16.msra.mxu0 0
          %829 = vmatprep.mubr.bf16.mxu0 0
          %830 = vmatmul.mubr.bf16.gmra.mrb[0].mxu0 %v271
          %v831 = vpop.f32.mrb[0].mxu0
          %v832 = vadd.f32 0.0, %v831
          %v833 = vpop.f32.mrb[0].mxu0
          %v834 = vpop.f32.mrb[0].mxu0
          %v835 = vadd.f32 0.0, %v834
          %v836 = vpop.f32.mrb[0].mxu0
          %837 = vmatprep.mubr.bf16.mxu0 0
          %838 = vmatmul.mubr.bf16.gmra.mrb[0].mxu0 %v272
          %v839 = vpop.f32.mrb[0].mxu0
          %v840 = vadd.f32 0.0, %v839
          %v841 = vpop.f32.mrb[0].mxu0
          %v842 = vpop.f32.mrb[0].mxu0
          %v843 = vadd.f32 0.0, %v842
          %v844 = vpop.f32.mrb[0].mxu0
          %845 = vmatprep.mubr.bf16.mxu0 0
          %846 = vmatmul.mubr.bf16.gmra.mrb[0].mxu0 %v273
          %v847 = vpop.f32.mrb[0].mxu0
          %v848 = vadd.f32 0.0, %v847
          %v849 = vpop.f32.mrb[0].mxu0
          %v850 = vpop.f32.mrb[0].mxu0
          %v851 = vadd.f32 0.0, %v850
          %v852 = vpop.f32.mrb[0].mxu0
          %853 = vmatprep.mubr.bf16.mxu0 0
          %854 = vmatmul.mubr.bf16.gmra.mrb[0].mxu0 %v274
          %v855 = vpop.f32.mrb[0].mxu0
          %v856 = vadd.f32 0.0, %v855
          %v857 = vpop.f32.mrb[0].mxu0
          %v858 = vpop.f32.mrb[0].mxu0
          %v859 = vadd.f32 0.0, %v858
          %v860 = vpop.f32.mrb[0].mxu0
          %861 = vmatprep.mubr.bf16.mxu0 0
          %862 = vmatmul.mubr.bf16.gmra.mrb[0].mxu0 %v275
          %v863 = vpop.f32.mrb[0].mxu0
          %v864 = vadd.f32 0.0, %v863
          %v865 = vpop.f32.mrb[0].mxu0
          %v866 = vpop.f32.mrb[0].mxu0
          %v867 = vadd.f32 0.0, %v866
          %v868 = vpop.f32.mrb[0].mxu0
          %869 = vmatprep.mubr.bf16.mxu0 0
          %870 = vmatmul.mubr.bf16.gmra.mrb[0].mxu0 %v276
          %v871 = vpop.f32.mrb[0].mxu0
          %v872 = vadd.f32 0.0, %v871
          %v873 = vpop.f32.mrb[0].mxu0
          %v874 = vpop.f32.mrb[0].mxu0
          %v875 = vadd.f32 0.0, %v874
          %v876 = vpop.f32.mrb[0].mxu0
          %877 = vmatprep.mubr.bf16.mxu0 0
          %878 = vmatmul.mubr.bf16.gmra.mrb[0].mxu0 %v277
          %v879 = vpop.f32.mrb[0].mxu0
          %v880 = vadd.f32 0.0, %v879
          %v881 = vpop.f32.mrb[0].mxu0
          %v882 = vpop.f32.mrb[0].mxu0
          %v883 = vadd.f32 0.0, %v882
          %v884 = vpop.f32.mrb[0].mxu0
          %885 = vmatprep.mubr.bf16.mxu0 0
          %886 = vmatmul.mubr.bf16.gmra.mrb[0].mxu0 %v278
          %v887 = vpop.f32.mrb[0].mxu0
          %v888 = vadd.f32 0.0, %v887
          %v889 = vpop.f32.mrb[0].mxu0
          %v890 = vpop.f32.mrb[0].mxu0
          %v891 = vadd.f32 0.0, %v890
          %v892 = vpop.f32.mrb[0].mxu0
          %893 = vdwg.mxu0
          %895 = vset.pattern.permute.xlu0 0
          %896 = vperm.xlu0 %895, %v280
          %v897 = vpop.permute.xlu0 %896
          %900 = vset.pattern.permute.xlu0 0
          %901 = vperm.xlu0 %900, %v281
          %v902 = vpop.permute.xlu0 %901
          %905 = vset.pattern.permute.xlu0 0
          %906 = vperm.xlu0 %905, %v282
          %v907 = vpop.permute.xlu0 %906
          %910 = vset.pattern.permute.xlu0 0
          %911 = vperm.xlu0 %910, %v283
          %v912 = vpop.permute.xlu0 %911
          %915 = vset.pattern.permute.xlu0 0
          %916 = vperm.xlu0 %915, %v284
          %v917 = vpop.permute.xlu0 %916
          %920 = vset.pattern.permute.xlu0 0
          %921 = vperm.xlu0 %920, %v285
          %v922 = vpop.permute.xlu0 %921
          %925 = vset.pattern.permute.xlu0 0
          %926 = vperm.xlu0 %925, %v286
          %v927 = vpop.permute.xlu0 %926
          %930 = vset.pattern.permute.xlu0 0
          %931 = vperm.xlu0 %930, %v287
          %v932 = vpop.permute.xlu0 %931
          %935 = vset.pattern.permute.xlu0 0
          %936 = vperm.xlu0 %935, %v288
          %v937 = vpop.permute.xlu0 %936
          %940 = vset.pattern.permute.xlu0 0
          %941 = vperm.xlu0 %940, %v289
          %v942 = vpop.permute.xlu0 %941
          %945 = vset.pattern.permute.xlu0 0
          %946 = vperm.xlu0 %945, %v290
          %v947 = vpop.permute.xlu0 %946
          %950 = vset.pattern.permute.xlu0 0
          %951 = vperm.xlu0 %950, %v291
          %v952 = vpop.permute.xlu0 %951
          %955 = vset.pattern.permute.xlu0 0
          %956 = vperm.xlu0 %955, %v292
          %v957 = vpop.permute.xlu0 %956
          %960 = vset.pattern.permute.xlu0 0
          %961 = vperm.xlu0 %960, %v293
          %v962 = vpop.permute.xlu0 %961
          %965 = vset.pattern.permute.xlu0 0
          %966 = vperm.xlu0 %965, %v294
          %v967 = vpop.permute.xlu0 %966
          %970 = vset.pattern.permute.xlu0 0
          %971 = vperm.xlu0 %970, %v295
          %v972 = vpop.permute.xlu0 %971
          %v974 = vmul.f32 %v832, %v897
          %v975 = vmul.f32 %v835, %v902
          %v976 = vmul.f32 %v840, %v907
          %v977 = vmul.f32 %v843, %v912
          %v978 = vmul.f32 %v848, %v917
          %v979 = vmul.f32 %v851, %v922
          %v980 = vmul.f32 %v856, %v927
          %v981 = vmul.f32 %v859, %v932
          %v982 = vmul.f32 %v864, %v937
          %v983 = vmul.f32 %v867, %v942
          %v984 = vmul.f32 %v872, %v947
          %v985 = vmul.f32 %v875, %v952
          %v986 = vmul.f32 %v880, %v957
          %v987 = vmul.f32 %v883, %v962
          %v988 = vmul.f32 %v888, %v967
          %v989 = vmul.f32 %v891, %v972
          %v990 = vld [vmem:[%s5] sm:$0x1]
          %v992 = vlaneseq
          %v993 = vshrl.u32 %v992, 7
          %v994 = vsub.s32 0, %v993
          %v995 = vrot.slane %v990, %v994
          %v997 = vadd.f32 %v974, %v995
          %v998 = vadd.f32 %v975, %v995
          %v999 = vadd.f32 %v976, %v995
          %v1000 = vadd.f32 %v977, %v995
          %v1001 = vadd.f32 %v978, %v995
          %v1002 = vadd.f32 %v979, %v995
          %v1003 = vadd.f32 %v980, %v995
          %v1004 = vadd.f32 %v981, %v995
          %v1005 = vadd.f32 %v982, %v995
          %v1006 = vadd.f32 %v983, %v995
          %v1007 = vadd.f32 %v984, %v995
          %v1008 = vadd.f32 %v985, %v995
          %v1009 = vadd.f32 %v986, %v995
          %v1010 = vadd.f32 %v987, %v995
          %v1011 = vadd.f32 %v988, %v995
          %v1012 = vadd.f32 %v989, %v995
          %1013 = vst [vmem:[%s258] sm:$0xff] %v997
          %1014 = vst [vmem:[%s258 + $0x8] sm:$0xff] %v998
          %1015 = vst [vmem:[%s258 + $0x10] sm:$0xff] %v999
          %1016 = vst [vmem:[%s258 + $0x18] sm:$0xff] %v1000
          %1017 = vst [vmem:[%s258 + $0x20] sm:$0xff] %v1001
          %1018 = vst [vmem:[%s258 + $0x28] sm:$0xff] %v1002
          %1019 = vst [vmem:[%s258 + $0x30] sm:$0xff] %v1003
          %1020 = vst [vmem:[%s258 + $0x38] sm:$0xff] %v1004
          %1021 = vst [vmem:[%s258 + $0x40] sm:$0xff] %v1005
          %1022 = vst [vmem:[%s258 + $0x48] sm:$0xff] %v1006
          %1023 = vst [vmem:[%s258 + $0x50] sm:$0xff] %v1007
          %1024 = vst [vmem:[%s258 + $0x58] sm:$0xff] %v1008
          %1025 = vst [vmem:[%s258 + $0x60] sm:$0xff] %v1009
          %1026 = vst [vmem:[%s258 + $0x68] sm:$0xff] %v1010
          %1027 = vst [vmem:[%s258 + $0x70] sm:$0xff] %v1011
          %1028 = vst [vmem:[%s258 + $0x78] sm:$0xff] %v1012
        $region56: #{tpu_custom_call.1} parent=43 // pred_fallthru
          _
        %s1029 = sand.u32 %s169, 1
        %s1030 = scalar_lea.sflag [#allocation5], %s1029
        %s1031 = sand.u32 %s169, 1
        %s1032 = smul.addr %s1031, 128
        %s1033 = scalar_lea.vmem [#allocation6], %s1032
        // Predicated region
        $region57: #{tpu_custom_call.1} parent=43 // pred_check
          %p1034 = pneg %p179
        $region58: #{tpu_custom_call.1} parent=43 // pred_check_branch
          %1036 = sbr.rel (%p1034) target = $region60
        $region59: #{tpu_custom_call.1} parent=43 // pred_region
          %s1037 = smul.u32 %s26, %s25
          %s1038 = smul.u32 16, %s1037
          %s1040 = ssub.s32 2048, 2048
          %1041 = vsyncadd %s1030, %s1040
          %s1042 = smul.addr %s1038, 128
          %s1043 = scalar_lea.hbm %s6, %s1042
          %s1044 = sshll.u32 %s1033, 4
          %s1045 = int_to_ptr.vmem [resolvable:$true] %s1044
          %1050 = dma.vmem_to_hbm [thread:$0]  %s1045, 2048, %s1043, %s1030, 128, 128, 8
        $region60: #{tpu_custom_call.1} parent=43 // pred_fallthru
          _
      $region44: #{tpu_custom_call.1} parent=5 // pred_fallthru
        _
      %p1051 = scmp.le.s32.totalorder 2, %s16
      // Predicated region
      $region61: #{tpu_custom_call.1} parent=5 // pred_check
        %p1052 = pneg %p1051
      $region62: #{tpu_custom_call.1} parent=5 // pred_check_branch
        %1054 = sbr.rel (%p1052) target = $region64
      $region63: #{tpu_custom_call.1} parent=5 // pred_region
        %s1055 = ssub.s32 %s16, 2
        // Predicated region
        $region65: #{tpu_custom_call.1} parent=63 // pred_check
          %p1056 = pneg %p185
        $region66: #{tpu_custom_call.1} parent=63 // pred_check_branch
          %1058 = sbr.rel (%p1056) target = $region68
        $region67: #{tpu_custom_call.1} parent=63 // pred_region
          %s1059 = sand.u32 %s170, 1
          %s1060 = scalar_lea.sflag [#allocation5], %s1059
          %s1061 = sand.u32 %s170, 1
          %s1062 = smul.addr %s1061, 128
          %s1063 = scalar_lea.vmem [#allocation6], %s1062
          %1064 = dma.done %s1060, 2048
        $region68: #{tpu_custom_call.1} parent=63 // pred_fallthru
          _
      $region64: #{tpu_custom_call.1} parent=5 // pred_fallthru
        _
    $region6: #{tpu_custom_call.1} parent=1 // loop_footer
      %s20 = sadd.s32 1, %s16
    $region7: #{tpu_custom_call.1} parent=1 // loop_footer_branch
      %15 = sbr.rel target = $region3
    $region8: #{tpu_custom_call.1} parent=1 // loop_exit
      _
    %1065 = vsyncpa [#allocation4], 1
    %s1066 = scalar_lea.sflag [#allocation4], 1
    %1067 = vsyncpa %s1066, 1
    %1068 = vsyncpa [#allocation5], 1
    %s1069 = scalar_lea.sflag [#allocation5], 1
    %1070 = vsyncpa %s1069, 1

// kernel: tpu_custom_call.1
$region0: #{tpu_custom_call.1}
  #allocation0 [shape = 'u32[]', space=smem, size = 0x4, offset = 0x4, fixed_abs, tag = 'smem constant byte address 0x4 - core index']
  #allocation1 [shape = 'u32[144,128]{1,0:T(1,128)}', space=vmem, size = 0x12000, scoped, tag = 'internal scratch']
  #allocation2 [shape = 'bf16[128,128]{1,0:T(16,128)(2,1)}', space=vmem, size = 0x8000, scoped, tag = 'scratch operand']
  %s0 = inlined_call_operand.hbm [shape: s8[128,128], index: 0, kind: input, shape index: {}]
  %s1 = inlined_call_operand.vmem [shape: f32[128,1], index: 1, kind: input, shape index: {}]
  %s2 = inlined_call_operand.vmem [shape: bf16[128,128], index: 2, kind: input, shape index: {}]
  %s3 = inlined_call_operand.vmem [shape: f32[1,128], index: 3, kind: input, shape index: {}]
  %s4 = inlined_call_operand.vmem [shape: bf16[128,128], index: 4, kind: input, shape index: {}]
  %s5 = inlined_call_operand.vmem [shape: f32[1,128], index: 5, kind: input, shape index: {}]
  %s6 = inlined_call_operand.hbm [shape: f32[128,128], index: 6, kind: output, shape index: {}]
  %s7 = sld [smem:[#allocation0]]
  $region69: #{tpu_custom_call.1} parent=0
    _
  %s9 = ssub.s32 1, %s7
  %s10 = scalar_select 0, %s9, %s7
  $region1: #{tpu_custom_call.1} parent=0
    #allocation3 [shape = 'u8[16384]{0}', space=vmem, size = 0x4000, scoped, tag = 'input window, operand 0, single buffered']
    #allocation4 [shape = 's32[2]{0}', space=sflag, size = 0x8, scoped, tag = 'scoped memory for tpu_custom_call.1']
    #allocation5 [shape = 's32[2]{0}', space=sflag, size = 0x8, scoped, tag = 'scoped memory for tpu_custom_call.1']
    #allocation6 [shape = 'u8[131072]{0}', space=vmem, size = 0x20000, scoped, tag = 'output window, operand 0']
    %11 = vsyncpa [#allocation4], 0
    %12 = vsyncpa [#allocation5], 0
    %s13 = scalar_lea.sflag [#allocation5], 1
    %14 = vsyncpa %s13, 0
    loop: start=0, step=1, limit=4
    $region2: #{tpu_custom_call.1} parent=1 // loop_pre_header
      _
    $region3: #{tpu_custom_call.1} parent=1 // loop_header
      %s16 = sphi 0, %s20
      %p17 = scmp.ge.s32.totalorder %s16, 4
      %s23 = sphi 0, %s35
      %s24 = sphi 0, %s31
      %s25 = sphi 0, %s23
      %s26 = sphi 0, %s24
      %s27 = sphi 0, %s25
      %s28 = sphi 0, %s26
      %s36 = sphi 0, %s36
      %s38 = sphi 0, %s36
      %s39 = sphi 0, %s38
      %s53 = sphi 0, %s39
      %s57 = sphi 0, %s57
      %s59 = sphi 0, %s57
      %s60 = sphi 0, %s59
      %s74 = sphi 0, %s60
      %s78 = sphi 0, %s78
      %s80 = sphi 0, %s78
      %s81 = sphi 0, %s80
      %s95 = sphi 0, %s81
      %s99 = sphi 0, %s99
      %s101 = sphi 0, %s99
      %s102 = sphi 0, %s101
      %s116 = sphi 0, %s102
      %s120 = sphi 0, %s120
      %s122 = sphi 0, %s120
      %s123 = sphi 0, %s122
      %s137 = sphi 0, %s123
      %s141 = sphi 0, %s141
      %s143 = sphi 0, %s141
      %s144 = sphi 0, %s143
      %s158 = sphi 0, %s144
      %s166 = sphi 0, %s168
      %s169 = sphi 0, %s166
      %s170 = sphi 0, %s169
      %s186 = sphi 0, %s170
    $region4: #{tpu_custom_call.1} parent=1 // loop_header_branch
      %19 = sbr.rel (%p17) target = $region8
    $region5: #{tpu_custom_call.1} parent=1 // loop_body
      %s21 = ssub.s32 %s16, 1
      %s22 = ssub.s32 %s16, 2
      %s29 = sadd.s32 1, %s24
      %p30 = scmp.ge.s32.totalorder %s29, 1
      %s31 = scalar_select %p30, 0, %s29
      %s32 = sadd.s32 1, %s23
      %s33 = scalar_select %p30, %s32, %s23
      %p34 = scmp.ge.s32.totalorder %s33, 2
      %s35 = scalar_select %p34, 0, %s33
      %s37 = sadd.s32 %s36, 1
      %p40 = scmp.eq.s32.totalorder %s16, 1
      %p41 = scmp.ne.s32.totalorder %s36, %s38
      %p42 = scmp.eq.s32.totalorder %s16, 0
      %p43 = por %p41, %p42
      %p44 = scmp.ne.s32.totalorder %s36, %s38
      %p45 = scmp.eq.s32.totalorder %s21, 1
      %p46 = por %p44, %p45
      %p47 = scmp.ne.s32.totalorder %s38, %s39
      %p48 = scmp.eq.s32.totalorder %s21, 0
      %p49 = por %p47, %p48
      %p50 = scmp.ne.s32.totalorder %s38, %s39
      %p51 = scmp.eq.s32.totalorder %s22, 1
      %p52 = por %p50, %p51
      %p54 = scmp.ne.s32.totalorder %s39, %s53
      %p55 = scmp.eq.s32.totalorder %s22, 0
      %p56 = por %p54, %p55
      %s58 = sadd.s32 %s57, 1
      %p61 = scmp.eq.s32.totalorder %s16, 1
      %p62 = scmp.ne.s32.totalorder %s57, %s59
      %p63 = scmp.eq.s32.totalorder %s16, 0
      %p64 = por %p62, %p63
      %p65 = scmp.ne.s32.totalorder %s57, %s59
      %p66 = scmp.eq.s32.totalorder %s21, 1
      %p67 = por %p65, %p66
      %p68 = scmp.ne.s32.totalorder %s59, %s60
      %p69 = scmp.eq.s32.totalorder %s21, 0
      %p70 = por %p68, %p69
      %p71 = scmp.ne.s32.totalorder %s59, %s60
      %p72 = scmp.eq.s32.totalorder %s22, 1
      %p73 = por %p71, %p72
      %p75 = scmp.ne.s32.totalorder %s60, %s74
      %p76 = scmp.eq.s32.totalorder %s22, 0
      %p77 = por %p75, %p76
      %s79 = sadd.s32 %s78, 1
      %p82 = scmp.eq.s32.totalorder %s16, 1
      %p83 = scmp.ne.s32.totalorder %s78, %s80
      %p84 = scmp.eq.s32.totalorder %s16, 0
      %p85 = por %p83, %p84
      %p86 = scmp.ne.s32.totalorder %s78, %s80
      %p87 = scmp.eq.s32.totalorder %s21, 1
      %p88 = por %p86, %p87
      %p89 = scmp.ne.s32.totalorder %s80, %s81
      %p90 = scmp.eq.s32.totalorder %s21, 0
      %p91 = por %p89, %p90
      %p92 = scmp.ne.s32.totalorder %s80, %s81
      %p93 = scmp.eq.s32.totalorder %s22, 1
      %p94 = por %p92, %p93
      %p96 = scmp.ne.s32.totalorder %s81, %s95
      %p97 = scmp.eq.s32.totalorder %s22, 0
      %p98 = por %p96, %p97
      %s100 = sadd.s32 %s99, 1
      %p103 = scmp.eq.s32.totalorder %s16, 1
      %p104 = scmp.ne.s32.totalorder %s99, %s101
      %p105 = scmp.eq.s32.totalorder %s16, 0
      %p106 = por %p104, %p105
      %p107 = scmp.ne.s32.totalorder %s99, %s101
      %p108 = scmp.eq.s32.totalorder %s21, 1
      %p109 = por %p107, %p108
      %p110 = scmp.ne.s32.totalorder %s101, %s102
      %p111 = scmp.eq.s32.totalorder %s21, 0
      %p112 = por %p110, %p111
      %p113 = scmp.ne.s32.totalorder %s101, %s102
      %p114 = scmp.eq.s32.totalorder %s22, 1
      %p115 = por %p113, %p114
      %p117 = scmp.ne.s32.totalorder %s102, %s116
      %p118 = scmp.eq.s32.totalorder %s22, 0
      %p119 = por %p117, %p118
      %s121 = sadd.s32 %s120, 1
      %p124 = scmp.eq.s32.totalorder %s16, 1
      %p125 = scmp.ne.s32.totalorder %s120, %s122
      %p126 = scmp.eq.s32.totalorder %s16, 0
      %p127 = por %p125, %p126
      %p128 = scmp.ne.s32.totalorder %s120, %s122
      %p129 = scmp.eq.s32.totalorder %s21, 1
      %p130 = por %p128, %p129
      %p131 = scmp.ne.s32.totalorder %s122, %s123
      %p132 = scmp.eq.s32.totalorder %s21, 0
      %p133 = por %p131, %p132
      %p134 = scmp.ne.s32.totalorder %s122, %s123
      %p135 = scmp.eq.s32.totalorder %s22, 1
      %p136 = por %p134, %p135
      %p138 = scmp.ne.s32.totalorder %s123, %s137
      %p139 = scmp.eq.s32.totalorder %s22, 0
      %p140 = por %p138, %p139
      %s142 = sadd.s32 %s141, 1
      %p145 = scmp.eq.s32.totalorder %s16, 1
      %p146 = scmp.ne.s32.totalorder %s141, %s143
      %p147 = scmp.eq.s32.totalorder %s16, 0
      %p148 = por %p146, %p147
      %p149 = scmp.ne.s32.totalorder %s141, %s143
      %p150 = scmp.eq.s32.totalorder %s21, 1
      %p151 = por %p149, %p150
      %p152 = scmp.ne.s32.totalorder %s143, %s144
      %p153 = scmp.eq.s32.totalorder %s21, 0
      %p154 = por %p152, %p153
      %p155 = scmp.ne.s32.totalorder %s143, %s144
      %p156 = scmp.eq.s32.totalorder %s22, 1
      %p157 = por %p155, %p156
      %p159 = scmp.ne.s32.totalorder %s144, %s158
      %p160 = scmp.eq.s32.totalorder %s22, 0
      %p161 = por %p159, %p160
      %s162 = smul.u32 %s24, %s23
      %s163 = smul.u32 %s31, %s35
      %s164 = ssub.s32 %s162, %s163
      %p165 = scmp.eq.s32.totalorder %s164, 0
      %s167 = sadd.s32 %s166, 1
      %s168 = scalar_select %p165, %s166, %s167
      %p171 = pneg %p165
      %p172 = scmp.eq.s32.totalorder %s16, 1
      %p173 = por %p171, %p172
      %p174 = scmp.ne.s32.totalorder %s166, %s169
      %p175 = scmp.eq.s32.totalorder %s16, 0
      %p176 = por %p174, %p175
      %p177 = scmp.ne.s32.totalorder %s166, %s169
      %p178 = scmp.eq.s32.totalorder %s21, 1
      %p179 = por %p177, %p178
      %p180 = scmp.ne.s32.totalorder %s169, %s170
      %p181 = scmp.eq.s32.totalorder %s21, 0
      %p182 = por %p180, %p181
      %p183 = scmp.ne.s32.totalorder %s169, %s170
      %p184 = scmp.eq.s32.totalorder %s22, 1
      %p185 = por %p183, %p184
      %p187 = scmp.ne.s32.totalorder %s170, %s186
      %p188 = scmp.eq.s32.totalorder %s22, 0
      %p189 = por %p187, %p188
      %p190 = scmp.le.s32.totalorder 1, %s16
      %p191 = scmp.lt.s32.totalorder %s16, 3
      %p192 = pnand %p190, %p191
      %p193 = pneg %p192
      // Predicated region
      $region9: #{tpu_custom_call.1} parent=5 // pred_check
        _
      $region10: #{tpu_custom_call.1} parent=5 // pred_check_branch
        %195 = sbr.rel (%p192) target = $region12
      $region11: #{tpu_custom_call.1} parent=5 // pred_region
        %s196 = ssub.s32 %s16, 1
        // Predicated region
        $region13: #{tpu_custom_call.1} parent=11 // pred_check
          %p197 = pneg %p49
        $region14: #{tpu_custom_call.1} parent=11 // pred_check_branch
          %199 = sbr.rel (%p197) target = $region16
        $region15: #{tpu_custom_call.1} parent=11 // pred_region
          %s201 = ssub.s32 512, 512
          %202 = vsyncadd [#allocation4], %s201
          %s203 = sshll.u32 [#allocation3], 4
          %s204 = int_to_ptr.vmem [resolvable:$true] %s203
          %209 = dma.hbm_to_vmem [thread:$0]  %s0, 512, %s204, [#allocation4], 128, 128, 8
        $region16: #{tpu_custom_call.1} parent=11 // pred_fallthru
          _
        // Predicated region
        $region17: #{tpu_custom_call.1} parent=11 // pred_check
          %p210 = pneg %p70
        $region18: #{tpu_custom_call.1} parent=11 // pred_check_branch
          %212 = sbr.rel (%p210) target = $region20
        $region19: #{tpu_custom_call.1} parent=11 // pred_region
          _
        $region20: #{tpu_custom_call.1} parent=11 // pred_fallthru
          _
        // Predicated region
        $region21: #{tpu_custom_call.1} parent=11 // pred_check
          %p213 = pneg %p91
        $region22: #{tpu_custom_call.1} parent=11 // pred_check_branch
          %215 = sbr.rel (%p213) target = $region24
        $region23: #{tpu_custom_call.1} parent=11 // pred_region
          _
        $region24: #{tpu_custom_call.1} parent=11 // pred_fallthru
          _
        // Predicated region
        $region25: #{tpu_custom_call.1} parent=11 // pred_check
          %p216 = pneg %p112
        $region26: #{tpu_custom_call.1} parent=11 // pred_check_branch
          %218 = sbr.rel (%p216) target = $region28
        $region27: #{tpu_custom_call.1} parent=11 // pred_region
          _
        $region28: #{tpu_custom_call.1} parent=11 // pred_fallthru
          _
        // Predicated region
        $region29: #{tpu_custom_call.1} parent=11 // pred_check
          %p219 = pneg %p133
        $region30: #{tpu_custom_call.1} parent=11 // pred_check_branch
          %221 = sbr.rel (%p219) target = $region32
        $region31: #{tpu_custom_call.1} parent=11 // pred_region
          _
        $region32: #{tpu_custom_call.1} parent=11 // pred_fallthru
          _
        // Predicated region
        $region33: #{tpu_custom_call.1} parent=11 // pred_check
          %p222 = pneg %p154
        $region34: #{tpu_custom_call.1} parent=11 // pred_check_branch
          %224 = sbr.rel (%p222) target = $region36
        $region35: #{tpu_custom_call.1} parent=11 // pred_region
          _
        $region36: #{tpu_custom_call.1} parent=11 // pred_fallthru
          _
      $region12: #{tpu_custom_call.1} parent=5 // pred_fallthru
        _
      %p225 = scmp.lt.s32.totalorder %s16, 2
      // Predicated region
      $region37: #{tpu_custom_call.1} parent=5 // pred_check
        %p226 = pneg %p225
      $region38: #{tpu_custom_call.1} parent=5 // pred_check_branch
        %228 = sbr.rel (%p226) target = $region40
      $region39: #{tpu_custom_call.1} parent=5 // pred_region
        _
      $region40: #{tpu_custom_call.1} parent=5 // pred_fallthru
        _
      %p229 = scmp.le.s32.totalorder 1, %s16
      %p230 = scmp.lt.s32.totalorder %s16, 3
      %p231 = pnand %p229, %p230
      %p232 = pneg %p231
      // Predicated region
      $region41: #{tpu_custom_call.1} parent=5 // pred_check
        _
      $region42: #{tpu_custom_call.1} parent=5 // pred_check_branch
        %234 = sbr.rel (%p231) target = $region44
      $region43: #{tpu_custom_call.1} parent=5 // pred_region
        %s235 = ssub.s32 %s16, 1
        // Predicated region
        $region45: #{tpu_custom_call.1} parent=43 // pred_check
          %p236 = pneg %p49
        $region46: #{tpu_custom_call.1} parent=43 // pred_check_branch
          %238 = sbr.rel (%p236) target = $region48
        $region47: #{tpu_custom_call.1} parent=43 // pred_region
          %239 = dma.done [#allocation4], 512
        $region48: #{tpu_custom_call.1} parent=43 // pred_fallthru
          _
        %p240 = pneg %p49
        %p241 = pneg %p46
        %p242 = pneg %p70
        %p243 = pneg %p67
        %p244 = pneg %p91
        %p245 = pneg %p88
        %p246 = pneg %p112
        %p247 = pneg %p109
        %p248 = pneg %p133
        %p249 = pneg %p130
        %p250 = pneg %p154
        %p251 = pneg %p151
        %p252 = pneg %p182
        %p253 = pneg %p179
        %s254 = sand.u32 %s169, 1
        %s255 = scalar_lea.sflag [#allocation5], %s254
        %s256 = sand.u32 %s169, 1
        %s257 = smul.addr %s256, 128
        %s258 = scalar_lea.vmem [#allocation6], %s257
        %s259 = smul.u32 %s26, %s25
        %s260 = smul.u32 16, %s259
        %s262 = smul.u32 %s26, 128
        %s263 = sshra.s32 %s262, 5
        %s264 = sand.u32 %s262, 31
        %s265 = smul.addr %s263, 8
        %s266 = scalar_lea.vmem [#allocation3], %s265
        %v267 = vld [vmem:[%s266] sm:$0xff]
        %v268 = vld [vmem:[%s266 + $0x8] sm:$0xff]
        %v269 = vld [vmem:[%s266 + $0x10] sm:$0xff]
        %v270 = vld [vmem:[%s266 + $0x18] sm:$0xff]
        %v271 = vunpack.c.l.s8.bf16 %v267
        %v272 = vunpack.c.h.s8.bf16 %v267
        %v273 = vunpack.c.l.s8.bf16 %v268
        %v274 = vunpack.c.h.s8.bf16 %v268
        %v275 = vunpack.c.l.s8.bf16 %v269
        %v276 = vunpack.c.h.s8.bf16 %v269
        %v277 = vunpack.c.l.s8.bf16 %v270
        %v278 = vunpack.c.h.s8.bf16 %v270
        %s279 = scalar_lea.vmem %s1, %s262
        %v280 = vld [vmem:[%s279] sm:$0xff]
        %v281 = vld [vmem:[%s279 + $0x8] sm:$0xff]
        %v282 = vld [vmem:[%s279 + $0x10] sm:$0xff]
        %v283 = vld [vmem:[%s279 + $0x18] sm:$0xff]
        %v284 = vld [vmem:[%s279 + $0x20] sm:$0xff]
        %v285 = vld [vmem:[%s279 + $0x28] sm:$0xff]
        %v286 = vld [vmem:[%s279 + $0x30] sm:$0xff]
        %v287 = vld [vmem:[%s279 + $0x38] sm:$0xff]
        %v288 = vld [vmem:[%s279 + $0x40] sm:$0xff]
        %v289 = vld [vmem:[%s279 + $0x48] sm:$0xff]
        %v290 = vld [vmem:[%s279 + $0x50] sm:$0xff]
        %v291 = vld [vmem:[%s279 + $0x58] sm:$0xff]
        %v292 = vld [vmem:[%s279 + $0x60] sm:$0xff]
        %v293 = vld [vmem:[%s279 + $0x68] sm:$0xff]
        %v294 = vld [vmem:[%s279 + $0x70] sm:$0xff]
        %v295 = vld [vmem:[%s279 + $0x78] sm:$0xff]
        %p296 = scmp.eq.s32.totalorder %s25, 0
        // Predicated region
        $region49: #{tpu_custom_call.1} parent=43 // pred_check
          %p297 = pneg %p296
        $region50: #{tpu_custom_call.1} parent=43 // pred_check_branch
          %299 = sbr.rel (%p297) target = $region52
        $region51: #{tpu_custom_call.1} parent=43 // pred_region
          %v300 = vld [vmem:[%s2] sm:$0xf]
          %v301 = vld [vmem:[%s2 + $0x4] sm:$0xf]
          %v302 = vld [vmem:[%s2 + $0x8] sm:$0xf]
          %v303 = vld [vmem:[%s2 + $0xc] sm:$0xf]
          %v304 = vld [vmem:[%s2 + $0x10] sm:$0xf]
          %v305 = vld [vmem:[%s2 + $0x14] sm:$0xf]
          %v306 = vld [vmem:[%s2 + $0x18] sm:$0xf]
          %v307 = vld [vmem:[%s2 + $0x1c] sm:$0xf]
          %v308 = vld [vmem:[%s2 + $0x20] sm:$0xf]
          %v309 = vld [vmem:[%s2 + $0x24] sm:$0xf]
          %v310 = vld [vmem:[%s2 + $0x28] sm:$0xf]
          %v311 = vld [vmem:[%s2 + $0x2c] sm:$0xf]
          %v312 = vld [vmem:[%s2 + $0x30] sm:$0xf]
          %v313 = vld [vmem:[%s2 + $0x34] sm:$0xf]
          %v314 = vld [vmem:[%s2 + $0x38] sm:$0xf]
          %v315 = vld [vmem:[%s2 + $0x3c] sm:$0xf]
          %v332 = vunpack.c.l.b16 %v300
          %v333 = vunpack.c.l.b16 %v301
          %v334 = vunpack.c.l.b16 %v302
          %v335 = vunpack.c.l.b16 %v303
          %v336 = vunpack.c.l.b16 %v304
          %v337 = vunpack.c.l.b16 %v305
          %v338 = vunpack.c.l.b16 %v306
          %v339 = vunpack.c.l.b16 %v307
          %v340 = vunpack.c.l.b16 %v308
          %v341 = vunpack.c.l.b16 %v309
          %v342 = vunpack.c.l.b16 %v310
          %v343 = vunpack.c.l.b16 %v311
          %v344 = vunpack.c.l.b16 %v312
          %v345 = vunpack.c.l.b16 %v313
          %v346 = vunpack.c.l.b16 %v314
          %v347 = vunpack.c.l.b16 %v315
          %v348 = vpack.c.b16 %v333, %v332
          %v349 = vpack.c.b16 %v335, %v334
          %v350 = vpack.c.b16 %v337, %v336
          %v351 = vpack.c.b16 %v339, %v338
          %v352 = vpack.c.b16 %v341, %v340
          %v353 = vpack.c.b16 %v343, %v342
          %v354 = vpack.c.b16 %v345, %v344
          %v355 = vpack.c.b16 %v347, %v346
          %364 = vmatprep.subr.bf16.mxu0 0
          %365 = vmatpush1.bf16.msra.mxu0 %v348
          %366 = vmatprep.subr.bf16.mxu0 0
          %367 = vmatpush1.bf16.msra.mxu0 %v349
          %368 = vmatprep.subr.bf16.mxu0 0
          %369 = vmatpush1.bf16.msra.mxu0 %v350
          %370 = vmatprep.subr.bf16.mxu0 0
          %371 = vmatpush1.bf16.msra.mxu0 %v351
          %372 = vmatprep.subr.bf16.mxu0 0
          %373 = vmatpush1.bf16.msra.mxu0 %v352
          %374 = vmatprep.subr.bf16.mxu0 0
          %375 = vmatpush1.bf16.msra.mxu0 %v353
          %376 = vmatprep.subr.bf16.mxu0 0
          %377 = vmatpush1.bf16.msra.mxu0 %v354
          %378 = vmatprep.subr.bf16.mxu0 0
          %379 = vmatpush1.bf16.msra.mxu0 %v355
          %380 = vmatprep.subr.bf16.mxu0 0
          %381 = vmatpush1.bf16.msra.mxu0 0
          %382 = vmatprep.subr.bf16.mxu0 0
          %383 = vmatpush1.bf16.msra.mxu0 0
          %384 = vmatprep.subr.bf16.mxu0 0
          %385 = vmatpush1.bf16.msra.mxu0 0
          %386 = vmatprep.subr.bf16.mxu0 0
          %387 = vmatpush1.bf16.msra.mxu0 0
          %388 = vmatprep.subr.bf16.mxu0 0
          %389 = vmatpush1.bf16.msra.mxu0 0
          %390 = vmatprep.subr.bf16.mxu0 0
          %391 = vmatpush1.bf16.msra.mxu0 0
          %392 = vmatprep.subr.bf16.mxu0 0
          %393 = vmatpush1.bf16.msra.mxu0 0
          %394 = vmatprep.subr.bf16.mxu0 0
          %395 = vmatpush1.bf16.msra.mxu0 0
          %396 = vmatprep.mubr.bf16.mxu0 0
          %397 = vmatmul.mubr.bf16.gmra.mrb[0].mxu0 %v271
          %v398 = vpop.f32.mrb[0].mxu0
          %v399 = vadd.f32 0.0, %v398
          %v400 = vpop.f32.mrb[0].mxu0
          %v401 = vpop.f32.mrb[0].mxu0
          %v402 = vadd.f32 0.0, %v401
          %v403 = vpop.f32.mrb[0].mxu0
          %404 = vmatprep.mubr.bf16.mxu0 0
          %405 = vmatmul.mubr.bf16.gmra.mrb[0].mxu0 %v272
          %v406 = vpop.f32.mrb[0].mxu0
          %v407 = vadd.f32 0.0, %v406
          %v408 = vpop.f32.mrb[0].mxu0
          %v409 = vpop.f32.mrb[0].mxu0
          %v410 = vadd.f32 0.0, %v409
          %v411 = vpop.f32.mrb[0].mxu0
          %412 = vmatprep.mubr.bf16.mxu0 0
          %413 = vmatmul.mubr.bf16.gmra.mrb[0].mxu0 %v273
          %v414 = vpop.f32.mrb[0].mxu0
          %v415 = vadd.f32 0.0, %v414
          %v416 = vpop.f32.mrb[0].mxu0
          %v417 = vpop.f32.mrb[0].mxu0
          %v418 = vadd.f32 0.0, %v417
          %v419 = vpop.f32.mrb[0].mxu0
          %420 = vmatprep.mubr.bf16.mxu0 0
          %421 = vmatmul.mubr.bf16.gmra.mrb[0].mxu0 %v274
          %v422 = vpop.f32.mrb[0].mxu0
          %v423 = vadd.f32 0.0, %v422
          %v424 = vpop.f32.mrb[0].mxu0
          %v425 = vpop.f32.mrb[0].mxu0
          %v426 = vadd.f32 0.0, %v425
          %v427 = vpop.f32.mrb[0].mxu0
          %428 = vmatprep.mubr.bf16.mxu0 0
          %429 = vmatmul.mubr.bf16.gmra.mrb[0].mxu0 %v275
          %v430 = vpop.f32.mrb[0].mxu0
          %v431 = vadd.f32 0.0, %v430
          %v432 = vpop.f32.mrb[0].mxu0
          %v433 = vpop.f32.mrb[0].mxu0
          %v434 = vadd.f32 0.0, %v433
          %v435 = vpop.f32.mrb[0].mxu0
          %436 = vmatprep.mubr.bf16.mxu0 0
          %437 = vmatmul.mubr.bf16.gmra.mrb[0].mxu0 %v276
          %v438 = vpop.f32.mrb[0].mxu0
          %v439 = vadd.f32 0.0, %v438
          %v440 = vpop.f32.mrb[0].mxu0
          %v441 = vpop.f32.mrb[0].mxu0
          %v442 = vadd.f32 0.0, %v441
          %v443 = vpop.f32.mrb[0].mxu0
          %444 = vmatprep.mubr.bf16.mxu0 0
          %445 = vmatmul.mubr.bf16.gmra.mrb[0].mxu0 %v277
          %v446 = vpop.f32.mrb[0].mxu0
          %v447 = vadd.f32 0.0, %v446
          %v448 = vpop.f32.mrb[0].mxu0
          %v449 = vpop.f32.mrb[0].mxu0
          %v450 = vadd.f32 0.0, %v449
          %v451 = vpop.f32.mrb[0].mxu0
          %452 = vmatprep.mubr.bf16.mxu0 0
          %453 = vmatmul.mubr.bf16.gmra.mrb[0].mxu0 %v278
          %v454 = vpop.f32.mrb[0].mxu0
          %v455 = vadd.f32 0.0, %v454
          %v456 = vpop.f32.mrb[0].mxu0
          %v457 = vpop.f32.mrb[0].mxu0
          %v458 = vadd.f32 0.0, %v457
          %v459 = vpop.f32.mrb[0].mxu0
          %460 = vdwg.mxu0
          %462 = vset.pattern.permute.xlu0 0
          %463 = vperm.xlu0 %462, %v280
          %v464 = vpop.permute.xlu0 %463
          %467 = vset.pattern.permute.xlu0 0
          %468 = vperm.xlu0 %467, %v281
          %v469 = vpop.permute.xlu0 %468
          %472 = vset.pattern.permute.xlu0 0
          %473 = vperm.xlu0 %472, %v282
          %v474 = vpop.permute.xlu0 %473
          %477 = vset.pattern.permute.xlu0 0
          %478 = vperm.xlu0 %477, %v283
          %v479 = vpop.permute.xlu0 %478
          %482 = vset.pattern.permute.xlu0 0
          %483 = vperm.xlu0 %482, %v284
          %v484 = vpop.permute.xlu0 %483
          %487 = vset.pattern.permute.xlu0 0
          %488 = vperm.xlu0 %487, %v285
          %v489 = vpop.permute.xlu0 %488
          %492 = vset.pattern.permute.xlu0 0
          %493 = vperm.xlu0 %492, %v286
          %v494 = vpop.permute.xlu0 %493
          %497 = vset.pattern.permute.xlu0 0
          %498 = vperm.xlu0 %497, %v287
          %v499 = vpop.permute.xlu0 %498
          %502 = vset.pattern.permute.xlu0 0
          %503 = vperm.xlu0 %502, %v288
          %v504 = vpop.permute.xlu0 %503
          %507 = vset.pattern.permute.xlu0 0
          %508 = vperm.xlu0 %507, %v289
          %v509 = vpop.permute.xlu0 %508
          %512 = vset.pattern.permute.xlu0 0
          %513 = vperm.xlu0 %512, %v290
          %v514 = vpop.permute.xlu0 %513
          %517 = vset.pattern.permute.xlu0 0
          %518 = vperm.xlu0 %517, %v291
          %v519 = vpop.permute.xlu0 %518
          %522 = vset.pattern.permute.xlu0 0
          %523 = vperm.xlu0 %522, %v292
          %v524 = vpop.permute.xlu0 %523
          %527 = vset.pattern.permute.xlu0 0
          %528 = vperm.xlu0 %527, %v293
          %v529 = vpop.permute.xlu0 %528
          %532 = vset.pattern.permute.xlu0 0
          %533 = vperm.xlu0 %532, %v294
          %v534 = vpop.permute.xlu0 %533
          %537 = vset.pattern.permute.xlu0 0
          %538 = vperm.xlu0 %537, %v295
          %v539 = vpop.permute.xlu0 %538
          %v541 = vmul.f32 %v399, %v464
          %v542 = vmul.f32 %v402, %v469
          %v543 = vmul.f32 %v407, %v474
          %v544 = vmul.f32 %v410, %v479
          %v545 = vmul.f32 %v415, %v484
          %v546 = vmul.f32 %v418, %v489
          %v547 = vmul.f32 %v423, %v494
          %v548 = vmul.f32 %v426, %v499
          %v549 = vmul.f32 %v431, %v504
          %v550 = vmul.f32 %v434, %v509
          %v551 = vmul.f32 %v439, %v514
          %v552 = vmul.f32 %v442, %v519
          %v553 = vmul.f32 %v447, %v524
          %v554 = vmul.f32 %v450, %v529
          %v555 = vmul.f32 %v455, %v534
          %v556 = vmul.f32 %v458, %v539
          %v557 = vld [vmem:[%s3] sm:$0x1]
          %v559 = vlaneseq
          %v560 = vshrl.u32 %v559, 7
          %v561 = vsub.s32 0, %v560
          %v562 = vrot.slane %v557, %v561
          %v564 = vadd.f32 %v541, %v562
          %v565 = vadd.f32 %v542, %v562
          %v566 = vadd.f32 %v543, %v562
          %v567 = vadd.f32 %v544, %v562
          %v568 = vadd.f32 %v545, %v562
          %v569 = vadd.f32 %v546, %v562
          %v570 = vadd.f32 %v547, %v562
          %v571 = vadd.f32 %v548, %v562
          %v572 = vadd.f32 %v549, %v562
          %v573 = vadd.f32 %v550, %v562
          %v574 = vadd.f32 %v551, %v562
          %v575 = vadd.f32 %v552, %v562
          %v576 = vadd.f32 %v553, %v562
          %v577 = vadd.f32 %v554, %v562
          %v578 = vadd.f32 %v555, %v562
          %v579 = vadd.f32 %v556, %v562
          %v580 = vmax.f32 %v564, 0.0
          %v581 = vmax.f32 %v565, 0.0
          %v582 = vmax.f32 %v566, 0.0
          %v583 = vmax.f32 %v567, 0.0
          %v584 = vmax.f32 %v568, 0.0
          %v585 = vmax.f32 %v569, 0.0
          %v586 = vmax.f32 %v570, 0.0
          %v587 = vmax.f32 %v571, 0.0
          %v588 = vmax.f32 %v572, 0.0
          %v589 = vmax.f32 %v573, 0.0
          %v590 = vmax.f32 %v574, 0.0
          %v591 = vmax.f32 %v575, 0.0
          %v592 = vmax.f32 %v576, 0.0
          %v593 = vmax.f32 %v577, 0.0
          %v594 = vmax.f32 %v578, 0.0
          %v595 = vmax.f32 %v579, 0.0
          %v596 = vpack.c.bf16 %v581, %v580
          %v597 = vpack.c.bf16 %v583, %v582
          %v598 = vpack.c.bf16 %v585, %v584
          %v599 = vpack.c.bf16 %v587, %v586
          %v600 = vpack.c.bf16 %v589, %v588
          %v601 = vpack.c.bf16 %v591, %v590
          %v602 = vpack.c.bf16 %v593, %v592
          %v603 = vpack.c.bf16 %v595, %v594
          %v604 = vld [vmem:[%s4] sm:$0xf]
          %v605 = vld [vmem:[%s4 + $0x4] sm:$0xf]
          %v606 = vld [vmem:[%s4 + $0x8] sm:$0xf]
          %v607 = vld [vmem:[%s4 + $0xc] sm:$0xf]
          %v608 = vld [vmem:[%s4 + $0x10] sm:$0xf]
          %v609 = vld [vmem:[%s4 + $0x14] sm:$0xf]
          %v610 = vld [vmem:[%s4 + $0x18] sm:$0xf]
          %v611 = vld [vmem:[%s4 + $0x1c] sm:$0xf]
          %v612 = vld [vmem:[%s4 + $0x20] sm:$0xf]
          %v613 = vld [vmem:[%s4 + $0x24] sm:$0xf]
          %v614 = vld [vmem:[%s4 + $0x28] sm:$0xf]
          %v615 = vld [vmem:[%s4 + $0x2c] sm:$0xf]
          %v616 = vld [vmem:[%s4 + $0x30] sm:$0xf]
          %v617 = vld [vmem:[%s4 + $0x34] sm:$0xf]
          %v618 = vld [vmem:[%s4 + $0x38] sm:$0xf]
          %v619 = vld [vmem:[%s4 + $0x3c] sm:$0xf]
          %v636 = vunpack.c.l.b16 %v604
          %v637 = vunpack.c.l.b16 %v605
          %v638 = vunpack.c.l.b16 %v606
          %v639 = vunpack.c.l.b16 %v607
          %v640 = vunpack.c.l.b16 %v608
          %v641 = vunpack.c.l.b16 %v609
          %v642 = vunpack.c.l.b16 %v610
          %v643 = vunpack.c.l.b16 %v611
          %v644 = vunpack.c.l.b16 %v612
          %v645 = vunpack.c.l.b16 %v613
          %v646 = vunpack.c.l.b16 %v614
          %v647 = vunpack.c.l.b16 %v615
          %v648 = vunpack.c.l.b16 %v616
          %v649 = vunpack.c.l.b16 %v617
          %v650 = vunpack.c.l.b16 %v618
          %v651 = vunpack.c.l.b16 %v619
          %v652 = vpack.c.b16 %v637, %v636
          %v653 = vpack.c.b16 %v639, %v638
          %v654 = vpack.c.b16 %v641, %v640
          %v655 = vpack.c.b16 %v643, %v642
          %v656 = vpack.c.b16 %v645, %v644
          %v657 = vpack.c.b16 %v647, %v646
          %v658 = vpack.c.b16 %v649, %v648
          %v659 = vpack.c.b16 %v651, %v650
          %668 = vmatprep.subr.bf16.mxu0 0
          %669 = vmatpush1.bf16.msra.mxu0 %v652
          %670 = vmatprep.subr.bf16.mxu0 0
          %671 = vmatpush1.bf16.msra.mxu0 %v653
          %672 = vmatprep.subr.bf16.mxu0 0
          %673 = vmatpush1.bf16.msra.mxu0 %v654
          %674 = vmatprep.subr.bf16.mxu0 0
          %675 = vmatpush1.bf16.msra.mxu0 %v655
          %676 = vmatprep.subr.bf16.mxu0 0
          %677 = vmatpush1.bf16.msra.mxu0 %v656
          %678 = vmatprep.subr.bf16.mxu0 0
          %679 = vmatpush1.bf16.msra.mxu0 %v657
          %680 = vmatprep.subr.bf16.mxu0 0
          %681 = vmatpush1.bf16.msra.mxu0 %v658
          %682 = vmatprep.subr.bf16.mxu0 0
          %683 = vmatpush1.bf16.msra.mxu0 %v659
          %684 = vmatprep.subr.bf16.mxu0 0
          %685 = vmatpush1.bf16.msra.mxu0 0
          %686 = vmatprep.subr.bf16.mxu0 0
          %687 = vmatpush1.bf16.msra.mxu0 0
          %688 = vmatprep.subr.bf16.mxu0 0
          %689 = vmatpush1.bf16.msra.mxu0 0
          %690 = vmatprep.subr.bf16.mxu0 0
          %691 = vmatpush1.bf16.msra.mxu0 0
          %692 = vmatprep.subr.bf16.mxu0 0
          %693 = vmatpush1.bf16.msra.mxu0 0
          %694 = vmatprep.subr.bf16.mxu0 0
          %695 = vmatpush1.bf16.msra.mxu0 0
          %696 = vmatprep.subr.bf16.mxu0 0
          %697 = vmatpush1.bf16.msra.mxu0 0
          %698 = vmatprep.subr.bf16.mxu0 0
          %699 = vmatpush1.bf16.msra.mxu0 0
          %700 = vmatprep.mubr.bf16.mxu0 0
          %701 = vmatmul.mubr.bf16.gmra.mrb[0].mxu0 %v596
          %v702 = vpop.f32.mrb[0].mxu0
          %v703 = vadd.f32 0.0, %v702
          %v704 = vpop.f32.mrb[0].mxu0
          %v705 = vpop.f32.mrb[0].mxu0
          %v706 = vadd.f32 0.0, %v705
          %v707 = vpop.f32.mrb[0].mxu0
          %708 = vmatprep.mubr.bf16.mxu0 0
          %709 = vmatmul.mubr.bf16.gmra.mrb[0].mxu0 %v597
          %v710 = vpop.f32.mrb[0].mxu0
          %v711 = vadd.f32 0.0, %v710
          %v712 = vpop.f32.mrb[0].mxu0
          %v713 = vpop.f32.mrb[0].mxu0
          %v714 = vadd.f32 0.0, %v713
          %v715 = vpop.f32.mrb[0].mxu0
          %716 = vmatprep.mubr.bf16.mxu0 0
          %717 = vmatmul.mubr.bf16.gmra.mrb[0].mxu0 %v598
          %v718 = vpop.f32.mrb[0].mxu0
          %v719 = vadd.f32 0.0, %v718
          %v720 = vpop.f32.mrb[0].mxu0
          %v721 = vpop.f32.mrb[0].mxu0
          %v722 = vadd.f32 0.0, %v721
          %v723 = vpop.f32.mrb[0].mxu0
          %724 = vmatprep.mubr.bf16.mxu0 0
          %725 = vmatmul.mubr.bf16.gmra.mrb[0].mxu0 %v599
          %v726 = vpop.f32.mrb[0].mxu0
          %v727 = vadd.f32 0.0, %v726
          %v728 = vpop.f32.mrb[0].mxu0
          %v729 = vpop.f32.mrb[0].mxu0
          %v730 = vadd.f32 0.0, %v729
          %v731 = vpop.f32.mrb[0].mxu0
          %732 = vmatprep.mubr.bf16.mxu0 0
          %733 = vmatmul.mubr.bf16.gmra.mrb[0].mxu0 %v600
          %v734 = vpop.f32.mrb[0].mxu0
          %v735 = vadd.f32 0.0, %v734
          %v736 = vpop.f32.mrb[0].mxu0
          %v737 = vpop.f32.mrb[0].mxu0
          %v738 = vadd.f32 0.0, %v737
          %v739 = vpop.f32.mrb[0].mxu0
          %740 = vmatprep.mubr.bf16.mxu0 0
          %741 = vmatmul.mubr.bf16.gmra.mrb[0].mxu0 %v601
          %v742 = vpop.f32.mrb[0].mxu0
          %v743 = vadd.f32 0.0, %v742
          %v744 = vpop.f32.mrb[0].mxu0
          %v745 = vpop.f32.mrb[0].mxu0
          %v746 = vadd.f32 0.0, %v745
          %v747 = vpop.f32.mrb[0].mxu0
          %748 = vmatprep.mubr.bf16.mxu0 0
          %749 = vmatmul.mubr.bf16.gmra.mrb[0].mxu0 %v602
          %v750 = vpop.f32.mrb[0].mxu0
          %v751 = vadd.f32 0.0, %v750
          %v752 = vpop.f32.mrb[0].mxu0
          %v753 = vpop.f32.mrb[0].mxu0
          %v754 = vadd.f32 0.0, %v753
          %v755 = vpop.f32.mrb[0].mxu0
          %756 = vmatprep.mubr.bf16.mxu0 0
          %757 = vmatmul.mubr.bf16.gmra.mrb[0].mxu0 %v603
          %v758 = vpop.f32.mrb[0].mxu0
          %v759 = vadd.f32 0.0, %v758
          %v760 = vpop.f32.mrb[0].mxu0
          %v761 = vpop.f32.mrb[0].mxu0
          %v762 = vadd.f32 0.0, %v761
          %v763 = vpop.f32.mrb[0].mxu0
          %764 = vdwg.mxu0
          %v765 = vpack.c.bf16 %v706, %v703
          %v766 = vpack.c.bf16 %v714, %v711
          %v767 = vpack.c.bf16 %v722, %v719
          %v768 = vpack.c.bf16 %v730, %v727
          %v769 = vpack.c.bf16 %v738, %v735
          %v770 = vpack.c.bf16 %v746, %v743
          %v771 = vpack.c.bf16 %v754, %v751
          %v772 = vpack.c.bf16 %v762, %v759
          %s773 = sshra.s32 %s262, 4
          %s774 = sand.u32 %s262, 15
          %s775 = smul.addr %s773, 8
          %s776 = scalar_lea.vmem [#allocation2], %s775
          %777 = vst [vmem:[%s776] sm:$0xff] %v765
          %778 = vst [vmem:[%s776 + $0x8] sm:$0xff] %v766
          %779 = vst [vmem:[%s776 + $0x10] sm:$0xff] %v767
          %780 = vst [vmem:[%s776 + $0x18] sm:$0xff] %v768
          %781 = vst [vmem:[%s776 + $0x20] sm:$0xff] %v769
          %782 = vst [vmem:[%s776 + $0x28] sm:$0xff] %v770
          %783 = vst [vmem:[%s776 + $0x30] sm:$0xff] %v771
          %784 = vst [vmem:[%s776 + $0x38] sm:$0xff] %v772
        $region52: #{tpu_custom_call.1} parent=43 // pred_fallthru
          _
        %p785 = scmp.eq.s32.totalorder %s25, 1
        // Predicated region
        $region53: #{tpu_custom_call.1} parent=43 // pred_check
          %p786 = pneg %p785
        $region54: #{tpu_custom_call.1} parent=43 // pred_check_branch
          %788 = sbr.rel (%p786) target = $region56
        $region55: #{tpu_custom_call.1} parent=43 // pred_region
          %v789 = vld [vmem:[#allocation2] sm:$0xff]
          %v790 = vld [vmem:[#allocation2 + $0x8] sm:$0xff]
          %v791 = vld [vmem:[#allocation2 + $0x10] sm:$0xff]
          %v792 = vld [vmem:[#allocation2 + $0x18] sm:$0xff]
          %v793 = vld [vmem:[#allocation2 + $0x20] sm:$0xff]
          %v794 = vld [vmem:[#allocation2 + $0x28] sm:$0xff]
          %v795 = vld [vmem:[#allocation2 + $0x30] sm:$0xff]
          %v796 = vld [vmem:[#allocation2 + $0x38] sm:$0xff]
          %797 = vmatprep.subr.bf16.mxu0 0
          %798 = vmatpush1.bf16.msra.mxu0 %v789
          %799 = vmatprep.subr.bf16.mxu0 0
          %800 = vmatpush1.bf16.msra.mxu0 %v790
          %801 = vmatprep.subr.bf16.mxu0 0
          %802 = vmatpush1.bf16.msra.mxu0 %v791
          %803 = vmatprep.subr.bf16.mxu0 0
          %804 = vmatpush1.bf16.msra.mxu0 %v792
          %805 = vmatprep.subr.bf16.mxu0 0
          %806 = vmatpush1.bf16.msra.mxu0 %v793
          %807 = vmatprep.subr.bf16.mxu0 0
          %808 = vmatpush1.bf16.msra.mxu0 %v794
          %809 = vmatprep.subr.bf16.mxu0 0
          %810 = vmatpush1.bf16.msra.mxu0 %v795
          %811 = vmatprep.subr.bf16.mxu0 0
          %812 = vmatpush1.bf16.msra.mxu0 %v796
          %813 = vmatprep.subr.bf16.mxu0 0
          %814 = vmatpush1.bf16.msra.mxu0 0
          %815 = vmatprep.subr.bf16.mxu0 0
          %816 = vmatpush1.bf16.msra.mxu0 0
          %817 = vmatprep.subr.bf16.mxu0 0
          %818 = vmatpush1.bf16.msra.mxu0 0
          %819 = vmatprep.subr.bf16.mxu0 0
          %820 = vmatpush1.bf16.msra.mxu0 0
          %821 = vmatprep.subr.bf16.mxu0 0
          %822 = vmatpush1.bf16.msra.mxu0 0
          %823 = vmatprep.subr.bf16.mxu0 0
          %824 = vmatpush1.bf16.msra.mxu0 0
          %825 = vmatprep.subr.bf16.mxu0 0
          %826 = vmatpush1.bf16.msra.mxu0 0
          %827 = vmatprep.subr.bf16.mxu0 0
          %828 = vmatpush1.bf16.msra.mxu0 0
          %829 = vmatprep.mubr.bf16.mxu0 0
          %830 = vmatmul.mubr.bf16.gmra.mrb[0].mxu0 %v271
          %v831 = vpop.f32.mrb[0].mxu0
          %v832 = vadd.f32 0.0, %v831
          %v833 = vpop.f32.mrb[0].mxu0
          %v834 = vpop.f32.mrb[0].mxu0
          %v835 = vadd.f32 0.0, %v834
          %v836 = vpop.f32.mrb[0].mxu0
          %837 = vmatprep.mubr.bf16.mxu0 0
          %838 = vmatmul.mubr.bf16.gmra.mrb[0].mxu0 %v272
          %v839 = vpop.f32.mrb[0].mxu0
          %v840 = vadd.f32 0.0, %v839
          %v841 = vpop.f32.mrb[0].mxu0
          %v842 = vpop.f32.mrb[0].mxu0
          %v843 = vadd.f32 0.0, %v842
          %v844 = vpop.f32.mrb[0].mxu0
          %845 = vmatprep.mubr.bf16.mxu0 0
          %846 = vmatmul.mubr.bf16.gmra.mrb[0].mxu0 %v273
          %v847 = vpop.f32.mrb[0].mxu0
          %v848 = vadd.f32 0.0, %v847
          %v849 = vpop.f32.mrb[0].mxu0
          %v850 = vpop.f32.mrb[0].mxu0
          %v851 = vadd.f32 0.0, %v850
          %v852 = vpop.f32.mrb[0].mxu0
          %853 = vmatprep.mubr.bf16.mxu0 0
          %854 = vmatmul.mubr.bf16.gmra.mrb[0].mxu0 %v274
          %v855 = vpop.f32.mrb[0].mxu0
          %v856 = vadd.f32 0.0, %v855
          %v857 = vpop.f32.mrb[0].mxu0
          %v858 = vpop.f32.mrb[0].mxu0
          %v859 = vadd.f32 0.0, %v858
          %v860 = vpop.f32.mrb[0].mxu0
          %861 = vmatprep.mubr.bf16.mxu0 0
          %862 = vmatmul.mubr.bf16.gmra.mrb[0].mxu0 %v275
          %v863 = vpop.f32.mrb[0].mxu0
          %v864 = vadd.f32 0.0, %v863
          %v865 = vpop.f32.mrb[0].mxu0
          %v866 = vpop.f32.mrb[0].mxu0
          %v867 = vadd.f32 0.0, %v866
          %v868 = vpop.f32.mrb[0].mxu0
          %869 = vmatprep.mubr.bf16.mxu0 0
          %870 = vmatmul.mubr.bf16.gmra.mrb[0].mxu0 %v276
          %v871 = vpop.f32.mrb[0].mxu0
          %v872 = vadd.f32 0.0, %v871
          %v873 = vpop.f32.mrb[0].mxu0
          %v874 = vpop.f32.mrb[0].mxu0
          %v875 = vadd.f32 0.0, %v874
          %v876 = vpop.f32.mrb[0].mxu0
          %877 = vmatprep.mubr.bf16.mxu0 0
          %878 = vmatmul.mubr.bf16.gmra.mrb[0].mxu0 %v277
          %v879 = vpop.f32.mrb[0].mxu0
          %v880 = vadd.f32 0.0, %v879
          %v881 = vpop.f32.mrb[0].mxu0
          %v882 = vpop.f32.mrb[0].mxu0
          %v883 = vadd.f32 0.0, %v882
          %v884 = vpop.f32.mrb[0].mxu0
          %885 = vmatprep.mubr.bf16.mxu0 0
          %886 = vmatmul.mubr.bf16.gmra.mrb[0].mxu0 %v278
          %v887 = vpop.f32.mrb[0].mxu0
          %v888 = vadd.f32 0.0, %v887
          %v889 = vpop.f32.mrb[0].mxu0
          %v890 = vpop.f32.mrb[0].mxu0
          %v891 = vadd.f32 0.0, %v890
          %v892 = vpop.f32.mrb[0].mxu0
          %893 = vdwg.mxu0
          %895 = vset.pattern.permute.xlu0 0
          %896 = vperm.xlu0 %895, %v280
          %v897 = vpop.permute.xlu0 %896
          %900 = vset.pattern.permute.xlu0 0
          %901 = vperm.xlu0 %900, %v281
          %v902 = vpop.permute.xlu0 %901
          %905 = vset.pattern.permute.xlu0 0
          %906 = vperm.xlu0 %905, %v282
          %v907 = vpop.permute.xlu0 %906
          %910 = vset.pattern.permute.xlu0 0
          %911 = vperm.xlu0 %910, %v283
          %v912 = vpop.permute.xlu0 %911
          %915 = vset.pattern.permute.xlu0 0
          %916 = vperm.xlu0 %915, %v284
          %v917 = vpop.permute.xlu0 %916
          %920 = vset.pattern.permute.xlu0 0
          %921 = vperm.xlu0 %920, %v285
          %v922 = vpop.permute.xlu0 %921
          %925 = vset.pattern.permute.xlu0 0
          %926 = vperm.xlu0 %925, %v286
          %v927 = vpop.permute.xlu0 %926
          %930 = vset.pattern.permute.xlu0 0
          %931 = vperm.xlu0 %930, %v287
          %v932 = vpop.permute.xlu0 %931
          %935 = vset.pattern.permute.xlu0 0
          %936 = vperm.xlu0 %935, %v288
          %v937 = vpop.permute.xlu0 %936
          %940 = vset.pattern.permute.xlu0 0
          %941 = vperm.xlu0 %940, %v289
          %v942 = vpop.permute.xlu0 %941
          %945 = vset.pattern.permute.xlu0 0
          %946 = vperm.xlu0 %945, %v290
          %v947 = vpop.permute.xlu0 %946
          %950 = vset.pattern.permute.xlu0 0
          %951 = vperm.xlu0 %950, %v291
          %v952 = vpop.permute.xlu0 %951
          %955 = vset.pattern.permute.xlu0 0
          %956 = vperm.xlu0 %955, %v292
          %v957 = vpop.permute.xlu0 %956
          %960 = vset.pattern.permute.xlu0 0
          %961 = vperm.xlu0 %960, %v293
          %v962 = vpop.permute.xlu0 %961
          %965 = vset.pattern.permute.xlu0 0
          %966 = vperm.xlu0 %965, %v294
          %v967 = vpop.permute.xlu0 %966
          %970 = vset.pattern.permute.xlu0 0
          %971 = vperm.xlu0 %970, %v295
          %v972 = vpop.permute.xlu0 %971
          %v974 = vmul.f32 %v832, %v897
          %v975 = vmul.f32 %v835, %v902
          %v976 = vmul.f32 %v840, %v907
          %v977 = vmul.f32 %v843, %v912
          %v978 = vmul.f32 %v848, %v917
          %v979 = vmul.f32 %v851, %v922
          %v980 = vmul.f32 %v856, %v927
          %v981 = vmul.f32 %v859, %v932
          %v982 = vmul.f32 %v864, %v937
          %v983 = vmul.f32 %v867, %v942
          %v984 = vmul.f32 %v872, %v947
          %v985 = vmul.f32 %v875, %v952
          %v986 = vmul.f32 %v880, %v957
          %v987 = vmul.f32 %v883, %v962
          %v988 = vmul.f32 %v888, %v967
          %v989 = vmul.f32 %v891, %v972
          %v990 = vld [vmem:[%s5] sm:$0x1]
          %v992 = vlaneseq
          %v993 = vshrl.u32 %v992, 7
          %v994 = vsub.s32 0, %v993
          %v995 = vrot.slane %v990, %v994
          %v997 = vadd.f32 %v974, %v995
          %v998 = vadd.f32 %v975, %v995
          %v999 = vadd.f32 %v976, %v995
          %v1000 = vadd.f32 %v977, %v995
          %v1001 = vadd.f32 %v978, %v995
          %v1002 = vadd.f32 %v979, %v995
          %v1003 = vadd.f32 %v980, %v995
          %v1004 = vadd.f32 %v981, %v995
          %v1005 = vadd.f32 %v982, %v995
          %v1006 = vadd.f32 %v983, %v995
          %v1007 = vadd.f32 %v984, %v995
          %v1008 = vadd.f32 %v985, %v995
          %v1009 = vadd.f32 %v986, %v995
          %v1010 = vadd.f32 %v987, %v995
          %v1011 = vadd.f32 %v988, %v995
          %v1012 = vadd.f32 %v989, %v995
          %1013 = vst [vmem:[%s258] sm:$0xff] %v997
          %1014 = vst [vmem:[%s258 + $0x8] sm:$0xff] %v998
          %1015 = vst [vmem:[%s258 + $0x10] sm:$0xff] %v999
          %1016 = vst [vmem:[%s258 + $0x18] sm:$0xff] %v1000
          %1017 = vst [vmem:[%s258 + $0x20] sm:$0xff] %v1001
          %1018 = vst [vmem:[%s258 + $0x28] sm:$0xff] %v1002
          %1019 = vst [vmem:[%s258 + $0x30] sm:$0xff] %v1003
          %1020 = vst [vmem:[%s258 + $0x38] sm:$0xff] %v1004
          %1021 = vst [vmem:[%s258 + $0x40] sm:$0xff] %v1005
          %1022 = vst [vmem:[%s258 + $0x48] sm:$0xff] %v1006
          %1023 = vst [vmem:[%s258 + $0x50] sm:$0xff] %v1007
          %1024 = vst [vmem:[%s258 + $0x58] sm:$0xff] %v1008
          %1025 = vst [vmem:[%s258 + $0x60] sm:$0xff] %v1009
          %1026 = vst [vmem:[%s258 + $0x68] sm:$0xff] %v1010
          %1027 = vst [vmem:[%s258 + $0x70] sm:$0xff] %v1011
          %1028 = vst [vmem:[%s258 + $0x78] sm:$0xff] %v1012
        $region56: #{tpu_custom_call.1} parent=43 // pred_fallthru
          _
        %s1029 = sand.u32 %s169, 1
        %s1030 = scalar_lea.sflag [#allocation5], %s1029
        %s1031 = sand.u32 %s169, 1
        %s1032 = smul.addr %s1031, 128
        %s1033 = scalar_lea.vmem [#allocation6], %s1032
        // Predicated region
        $region57: #{tpu_custom_call.1} parent=43 // pred_check
          %p1034 = pneg %p179
        $region58: #{tpu_custom_call.1} parent=43 // pred_check_branch
          %1036 = sbr.rel (%p1034) target = $region60
        $region59: #{tpu_custom_call.1} parent=43 // pred_region
          %s1037 = smul.u32 %s26, %s25
          %s1038 = smul.u32 16, %s1037
          %s1040 = ssub.s32 2048, 2048
          %1041 = vsyncadd %s1030, %s1040
          %s1042 = smul.addr %s1038, 128
          %s1043 = scalar_lea.hbm %s6, %s1042
          %s1044 = sshll.u32 %s1033, 4
          %s1045 = int_to_ptr.vmem [resolvable:$true] %s1044
          %1050 = dma.vmem_to_hbm [thread:$0]  %s1045, 2048, %s1043, %s1030, 128, 128, 8
        $region60: #{tpu_custom_call.1} parent=43 // pred_fallthru
          _
      $region44: #{tpu_custom_call.1} parent=5 // pred_fallthru
        _
      %p1051 = scmp.le.s32.totalorder 2, %s16
      // Predicated region
      $region61: #{tpu_custom_call.1} parent=5 // pred_check
        %p1052 = pneg %p1051
      $region62: #{tpu_custom_call.1} parent=5 // pred_check_branch
        %1054 = sbr.rel (%p1052) target = $region64
      $region63: #{tpu_custom_call.1} parent=5 // pred_region
        %s1055 = ssub.s32 %s16, 2
        // Predicated region
        $region65: #{tpu_custom_call.1} parent=63 // pred_check
          %p1056 = pneg %p185
        $region66: #{tpu_custom_call.1} parent=63 // pred_check_branch
          %1058 = sbr.rel (%p1056) target = $region68
        $region67: #{tpu_custom_call.1} parent=63 // pred_region
          %s1059 = sand.u32 %s170, 1
          %s1060 = scalar_lea.sflag [#allocation5], %s1059
          %s1061 = sand.u32 %s170, 1
          %s1062 = smul.addr %s1061, 128
          %s1063 = scalar_lea.vmem [#allocation6], %s1062
          %1064 = dma.done %s1060, 2048
        $region68: #{tpu_custom_call.1} parent=63 // pred_fallthru
          _
      $region64: #{tpu_custom_call.1} parent=5 // pred_fallthru
        _
    $region6: #{tpu_custom_call.1} parent=1 // loop_footer
      %s20 = sadd.s32 1, %s16
    $region7: #{tpu_custom_call.1} parent=1 // loop_footer_branch
      %15 = sbr.rel target = $region3
    $region8: #{tpu_custom_call.1} parent=1 // loop_exit
      _
    %1065 = vsyncpa [#allocation4], 1
    %s1066 = scalar_lea.sflag [#allocation4], 1
    %1067 = vsyncpa %s1066, 1
    %1068 = vsyncpa [#allocation5], 1
    %s1069 = scalar_lea.sflag [#allocation5], 1
    %1070 = vsyncpa %s1069, 1

</llo_original>
